<compile_context>
chip_gen: v7x
topology: tpu7x:2x2x1
jax: 0.10.0
libtpu: 0.0.40
codegen_flags: <defaults>
</compile_context>

<pallas_src>
import functools

import jax
import jax.numpy as jnp
from jax.experimental import pallas as pl
from jax.experimental.pallas import tpu as pltpu


# ----------------------------------------------------------------------------
# Fused Pallas kernel: all layers, all batch elements, all timesteps.
# ----------------------------------------------------------------------------
def _encoder_seq_kernel(a_ref, a2_ref, x_ref, h0_ref, wg_ref, wc_ref, b_ref,
                        out_ref, hid_ref):
    """
    VMEM layouts (NU = num_nodes * rnn_units, B = batch, L = num_layers):
      a_ref   : (NU, NU)        kron(adj_masked.T, I_U)        (compute dtype)
      a2_ref  : (2NU, 2NU)      blockdiag(a, a)                (compute dtype)
      x_ref   : (1, B, NU)      current timestep input, zero-padded per node
      h0_ref  : (L, B, NU)      initial hidden state (f32)
      wg_ref  : (L, 2NU, 2NU)   [[kron(I,Wrx) kron(I,Wux)];[kron(I,Wrh) kron(I,Wuh)]]
      wc_ref  : (L, 2NU, NU)    [[kron(I,Wcx)];[kron(I,Wch)]]
      b_ref   : (8, NU)         rows 3l..3l+2 = node-tiled (br, bu, bc), f32
      out_ref : (1, B, NU)      top-layer hidden for this timestep (f32)
      hid_ref : (L, B, NU)      carried hidden state (resident across grid, f32)
    """
    t = pl.program_id(0)
    num_layers = hid_ref.shape[0]
    NU = a_ref.shape[0]
    cdt = wg_ref.dtype                       # matmul operand dtype (bf16 or f32)

    @pl.when(t == 0)
    def _():
        hid_ref[...] = h0_ref[...]

    a = a_ref[...]
    a2 = a2_ref[...]
    b = b_ref[...]
    x_l = x_ref[0]                           # (B, NU) f32

    for l in range(num_layers):              # static unroll; state stays in VMEM
        h = hid_ref[l]                       # (B, NU) f32
        br = b[3 * l + 0][None, :]
        bu = b[3 * l + 1][None, :]
        bc = b[3 * l + 2][None, :]

        # Gates: one projection matmul (K = 2NU), one aggregation matmul.
        xh = jnp.concatenate([x_l, h], axis=-1).astype(cdt)            # (B, 2NU)
        pg = jnp.dot(xh, wg_ref[l], preferred_element_type=jnp.float32)  # [pr|pu]
        gg = jnp.dot(pg.astype(cdt), a2, preferred_element_type=jnp.float32)
        r = jax.nn.sigmoid(gg[:, :NU] + br)
        u = jax.nn.sigmoid(gg[:, NU:] + bu)

        # Candidate: one projection matmul (K = 2NU), one aggregation matmul.
        xrh = jnp.concatenate([x_l, r * h], axis=-1).astype(cdt)       # (B, 2NU)
        pc = jnp.dot(xrh, wc_ref[l], preferred_element_type=jnp.float32)
        c = jnp.tanh(jnp.dot(pc.astype(cdt), a,
                             preferred_element_type=jnp.float32) + bc)

        h_new = u * h + (1.0 - u) * c
        hid_ref[l] = h_new
        x_l = h_new

    out_ref[0] = x_l


# ----------------------------------------------------------------------------
# One-time parameter / graph packing.
# ----------------------------------------------------------------------------
def pack_encoder_params(layer_params, adj, mask, num_nodes, input_dim, rnn_units,
                        compute_dtype=jnp.bfloat16):
    """Expand per-layer (wgx, wgh, bg, wcx, wch, bc) into the fused-kernel layout."""
    N, U = num_nodes, rnn_units
    NU = N * U
    L = len(layer_params)
    eye_n = jnp.eye(N, dtype=jnp.float32)
    eye_u = jnp.eye(U, dtype=jnp.float32)

    def pad_rows(w):                         # (d_in, U) -> (U, U) with zero rows
        w = w.astype(jnp.float32)
        return jnp.pad(w, ((0, U - w.shape[0]), (0, 0)))

    wg_list, wc_list, b_rows = [], [], []
    for wgx, wgh, bg, wcx, wch, bc in layer_params:
        wrx, wux = pad_rows(wgx[:, :U]), pad_rows(wgx[:, U:])
        wrh = wgh[:, :U].astype(jnp.float32)
        wuh = wgh[:, U:].astype(jnp.float32)
        wcx_p, wch_p = pad_rows(wcx), wch.astype(jnp.float32)

        top = jnp.concatenate([jnp.kron(eye_n, wrx), jnp.kron(eye_n, wux)], axis=1)
        bot = jnp.concatenate([jnp.kron(eye_n, wrh), jnp.kron(eye_n, wuh)], axis=1)
        wg_list.append(jnp.concatenate([top, bot], axis=0))             # (2NU, 2NU)
        wc_list.append(jnp.concatenate([jnp.kron(eye_n, wcx_p),
                                        jnp.kron(eye_n, wch_p)], axis=0))  # (2NU, NU)

        br, bu = bg[:, :U], bg[:, U:]
        for bias in (br, bu, bc):
            b_rows.append(jnp.tile(bias.astype(jnp.float32), (1, N)).reshape(NU))

    w_gate = jnp.stack(wg_list).astype(compute_dtype)        # (L, 2NU, 2NU)
    w_cand = jnp.stack(wc_list).astype(compute_dtype)        # (L, 2NU, NU)
    nrows = max(8, ((3 * L + 7) // 8) * 8)
    b_packed = jnp.zeros((nrows, NU), jnp.float32).at[:3 * L].set(jnp.stack(b_rows))

    # Adjacency expansion hoisted here (static per graph): right-multiplying a
    # (B, NU) row-major (node, unit) slab by kron(adj_masked.T, I_U) applies the
    # masked adjacency over the node axis.
    adj_m = (adj * mask).astype(jnp.float32)
    a = jnp.kron(adj_m.T, eye_u)                              # (NU, NU)
    a2 = jnp.kron(jnp.eye(2, dtype=jnp.float32), a)           # (2NU, 2NU)

    return dict(a=a.astype(compute_dtype), a2=a2.astype(compute_dtype),
                w_gate=w_gate, w_cand=w_cand, b=b_packed)


# ----------------------------------------------------------------------------
# Forward wrappers (packing glue in JAX, all compute in one pallas_call).
# ----------------------------------------------------------------------------
def encoder_forward_seq(x_seq, h0, packed, *, num_nodes, input_dim, rnn_units):
    """
    x_seq: (T, B, num_nodes * input_dim)
    h0:    (num_layers, B, num_nodes * rnn_units)
    returns: out_seq (T, B, num_nodes*rnn_units)  -- top-layer hidden per step
             hidden  (num_layers, B, num_nodes*rnn_units) -- final hidden state
    """
    T, B = x_seq.shape[0], x_seq.shape[1]
    N, U = num_nodes, rnn_units
    NU = N * U
    L = packed["w_gate"].shape[0]

    # Zero-pad per-node features from input_dim to rnn_units (lane-dense slab).
    x_pad = jnp.pad(
        x_seq.astype(jnp.float32).reshape(T, B, N, input_dim),
        ((0, 0), (0, 0), (0, 0), (0, U - input_dim))).reshape(T, B, NU)

    out_seq, hid = pl.pallas_call(
        _encoder_seq_kernel,
        grid=(T,),
        out_shape=(jax.ShapeDtypeStruct((T, B, NU), jnp.float32),
                   jax.ShapeDtypeStruct((L, B, NU), jnp.float32)),
        in_specs=[
            pl.BlockSpec((NU, NU), lambda t: (0, 0)),               # a (resident)
            pl.BlockSpec((2 * NU, 2 * NU), lambda t: (0, 0)),       # a2 (resident)
            pl.BlockSpec((1, B, NU), lambda t: (t, 0, 0)),          # x_t (streamed)
            pl.BlockSpec((L, B, NU), lambda t: (0, 0, 0)),          # h0 (resident)
            pl.BlockSpec((L, 2 * NU, 2 * NU), lambda t: (0, 0, 0)),  # Wg (resident)
            pl.BlockSpec((L, 2 * NU, NU), lambda t: (0, 0, 0)),     # Wc (resident)
            pl.BlockSpec(packed["b"].shape, lambda t: (0, 0)),      # bias slab
        ],
        out_specs=(pl.BlockSpec((1, B, NU), lambda t: (t, 0, 0)),   # per-step out
                   pl.BlockSpec((L, B, NU), lambda t: (0, 0, 0))),  # carried hidden
        compiler_params=pltpu.CompilerParams(
            dimension_semantics=("arbitrary",)),
    )(packed["a"], packed["a2"], x_pad, h0.astype(jnp.float32),
      packed["w_gate"], packed["w_cand"], packed["b"])
    return out_seq, hid


def encoder_forward(inputs, hidden_state, packed, *, num_nodes, input_dim, rnn_units):
    """Single-step forward matching EncoderModel.forward: (output, hidden_stack)."""
    B = inputs.shape[0]
    NU = num_nodes * rnn_units
    L = packed["w_gate"].shape[0]
    if hidden_state is None:
        hidden_state = jnp.zeros((L, B, NU), dtype=jnp.float32)
    out_seq, hid = encoder_forward_seq(
        inputs[None], hidden_state, packed,
        num_nodes=num_nodes, input_dim=input_dim, rnn_units=rnn_units)
    return out_seq[0], hid


# ----------------------------------------------------------------------------
# Pure-JAX reference (same math, unpacked layout) used to validate the kernel.
# ----------------------------------------------------------------------------
def _cell_ref(x, h, adj_masked, params):
    wgx, wgh, bg, wcx, wch, bc = params
    ax = jnp.einsum("ij,bjd->bid", adj_masked, x)
    ah = jnp.einsum("ij,bju->biu", adj_masked, h)
    gates = jax.nn.sigmoid(ax @ wgx + ah @ wgh + bg)
    U = h.shape[-1]
    r, u = gates[..., :U], gates[..., U:]
    arh = jnp.einsum("ij,bju->biu", adj_masked, r * h)
    c = jnp.tanh(ax @ wcx + arh @ wch + bc)
    return u * h + (1.0 - u) * c


def encoder_forward_ref(inputs, adj, mask, layer_params,
                        num_nodes, input_dim, rnn_units, hidden_state=None):
    B = inputs.shape[0]
    L = len(layer_params)
    hidden_size = num_nodes * rnn_units
    if hidden_state is None:
        hidden_state = jnp.zeros((L, B, hidden_size), dtype=jnp.float32)
    adj_masked = (adj * mask).astype(jnp.float32)
    output = inputs
    new_hidden = []
    for layer_num, params in enumerate(layer_params):
        d_in = input_dim if layer_num == 0 else rnn_units
        x = output.reshape(B, num_nodes, d_in).astype(jnp.float32)
        h = hidden_state[layer_num].reshape(B, num_nodes, rnn_units)
        h_new = _cell_ref(x, h, adj_masked, params)
        h_new_flat = h_new.reshape(B, hidden_size)
        new_hidden.append(h_new_flat)
        output = h_new_flat
    return output, jnp.stack(new_hidden)


def encoder_seq_ref(x_seq, adj, mask, layer_params, num_nodes, input_dim, rnn_units):
    h = None
    outs = []
    for t in range(x_seq.shape[0]):
        out, h = encoder_forward_ref(x_seq[t], adj, mask, layer_params,
                                     num_nodes=num_nodes, input_dim=input_dim,
                                     rnn_units=rnn_units, hidden_state=h)
        outs.append(out)
    return jnp.stack(outs), h


# ----------------------------------------------------------------------------
# Deterministic parameter construction.
# ----------------------------------------------------------------------------
def make_layer_params(key, d_in, rnn_units):
    U = rnn_units
    ks = jax.random.split(key, 6)
    scale = 0.1
    wgx = scale * jax.random.normal(ks[0], (d_in, 2 * U), jnp.float32)
    wgh = scale * jax.random.normal(ks[1], (U, 2 * U), jnp.float32)
    bg = scale * jax.random.normal(ks[2], (1, 2 * U), jnp.float32)
    wcx = scale * jax.random.normal(ks[3], (d_in, U), jnp.float32)
    wch = scale * jax.random.normal(ks[4], (U, U), jnp.float32)
    bc = scale * jax.random.normal(ks[5], (1, U), jnp.float32)
    return (wgx, wgh, bg, wcx, wch, bc)


if __name__ == "__main__":
    # Small, shape-consistent configuration (cf. model_kwargs):
    #   num_nodes=8, input_dim=2, rnn_units=16, num_rnn_layers=2, seq_len=8
    # -> num_nodes * rnn_units = 128 (exactly one lane-dense vreg row).
    batch = 2
    num_nodes = 8
    input_dim = 2
    rnn_units = 16
    num_rnn_layers = 2
    seq_len = 8

    key = jax.random.PRNGKey(0)
    k_in, k_adj, k_mask, k_p0, k_p1 = jax.random.split(key, 5)

    x_seq = jax.random.normal(
        k_in, (seq_len, batch, num_nodes * input_dim), dtype=jnp.float32)
    adj = jax.random.uniform(k_adj, (num_nodes, num_nodes), dtype=jnp.float32)
    mask = (jax.random.uniform(k_mask, (num_nodes, num_nodes)) > 0.3
            ).astype(jnp.float32)

    layer_params = [
        make_layer_params(k_p0, input_dim, rnn_units),
        make_layer_params(k_p1, rnn_units, rnn_units),
    ][:num_rnn_layers]

    # One-time packing (exact f32 path + fast bf16 path).
    packed_f32 = pack_encoder_params(layer_params, adj, mask, num_nodes,
                                     input_dim, rnn_units,
                                     compute_dtype=jnp.float32)
    packed_bf16 = pack_encoder_params(layer_params, adj, mask, num_nodes,
                                      input_dim, rnn_units,
                                      compute_dtype=jnp.bfloat16)

    statics = dict(num_nodes=num_nodes, input_dim=input_dim, rnn_units=rnn_units)
    fwd_seq = jax.jit(functools.partial(encoder_forward_seq, **statics))
    fwd_step = jax.jit(functools.partial(encoder_forward, **statics))

    hidden_size = num_nodes * rnn_units
    h0 = jnp.zeros((num_rnn_layers, batch, hidden_size), dtype=jnp.float32)

    # --- fused multi-step path (weights/adjacency resident across the grid) ---
    out_f32, hid_f32 = fwd_seq(x_seq, h0, packed_f32)
    out_bf16, hid_bf16 = fwd_seq(x_seq, h0, packed_bf16)
    # --- single-step path (matches EncoderModel.forward signature) ---
    out1, hid1 = fwd_step(x_seq[0], h0, packed_f32)
    jax.block_until_ready((out_f32, hid_f32, out_bf16, hid_bf16, out1, hid1))

    # Pure-JAX references.
    out_seq_ref, hid_seq_ref = encoder_seq_ref(
        x_seq, adj, mask, layer_params,
        num_nodes=num_nodes, input_dim=input_dim, rnn_units=rnn_units)
    out1_ref, hid1_ref = encoder_forward_ref(
        x_seq[0], adj, mask, layer_params,
        num_nodes=num_nodes, input_dim=input_dim, rnn_units=rnn_units)

    assert out_f32.shape == (seq_len, batch, hidden_size)
    assert hid_f32.shape == (num_rnn_layers, batch, hidden_size)
    assert out1.shape == (batch, hidden_size)
    assert hid1.shape == (num_rnn_layers, batch, hidden_size)

    # f32 packing: exact math (re-association + kron expansion are exact).
    assert jnp.allclose(out_f32, out_seq_ref, atol=1e-4, rtol=1e-4)
    assert jnp.allclose(hid_f32, hid_seq_ref, atol=1e-4, rtol=1e-4)
    assert jnp.allclose(out1, out1_ref, atol=1e-4, rtol=1e-4)
    assert jnp.allclose(hid1, hid1_ref, atol=1e-4, rtol=1e-4)

    # bf16 operand packing: deliberately loosened tolerance vs the f32 reference
    # (bf16 operands, f32 accumulation).
    assert jnp.allclose(out_bf16, out_seq_ref, atol=5e-2, rtol=5e-2)
    assert jnp.allclose(hid_bf16, hid_seq_ref, atol=5e-2, rtol=5e-2)

    print("KERNEL_OK")
</pallas_src>

<mosaic_0001>
module attributes {stable_mosaic.version = 11 : i64} {
  func.func @_encoder_seq_kernel(%arg0: i32, %arg1: memref<128x128xf32, #tpu.memory_space<vmem>>, %arg2: memref<256x256xf32, #tpu.memory_space<vmem>>, %arg3: memref<1x2x128xf32, #tpu.memory_space<vmem>>, %arg4: memref<2x2x128xf32, #tpu.memory_space<vmem>>, %arg5: memref<2x256x256xf32, #tpu.memory_space<vmem>>, %arg6: memref<2x256x128xf32, #tpu.memory_space<vmem>>, %arg7: memref<8x128xf32, #tpu.memory_space<vmem>>, %arg8: memref<1x2x128xf32, #tpu.memory_space<vmem>>, %arg9: memref<2x2x128xf32, #tpu.memory_space<vmem>>) attributes {dimension_semantics = [#tpu.dimension_semantics<arbitrary>], iteration_bounds = array<i64: 8>, scalar_prefetch = 0 : i64, scratch_operands = 0 : i64, tpu.core_type = #tpu.core_type<tc>, window_params = [{pipeline_mode = #tpu.pipeline_mode<synchronous>, transform_indices = @transform_0, window_bounds = array<i64: 128, 128>}, {pipeline_mode = #tpu.pipeline_mode<synchronous>, transform_indices = @transform_1, window_bounds = array<i64: 256, 256>}, {transform_indices = @transform_2, window_bounds = array<i64: 1, 2, 128>}, {pipeline_mode = #tpu.pipeline_mode<synchronous>, transform_indices = @transform_3, window_bounds = array<i64: 2, 2, 128>}, {pipeline_mode = #tpu.pipeline_mode<synchronous>, transform_indices = @transform_4, window_bounds = array<i64: 2, 256, 256>}, {pipeline_mode = #tpu.pipeline_mode<synchronous>, transform_indices = @transform_5, window_bounds = array<i64: 2, 256, 128>}, {pipeline_mode = #tpu.pipeline_mode<synchronous>, transform_indices = @transform_6, window_bounds = array<i64: 8, 128>}, {transform_indices = @transform_7, window_bounds = array<i64: 1, 2, 128>}, {pipeline_mode = #tpu.pipeline_mode<synchronous>, transform_indices = @transform_8, window_bounds = array<i64: 2, 2, 128>}]} {
    %c0_i32 = arith.constant 0 : i32
    %0 = arith.cmpi eq, %arg0, %c0_i32 : i32
    %1 = arith.extui %0 : i1 to i32
    %c0_i32_0 = arith.constant 0 : i32
    %2 = arith.cmpi ne, %1, %c0_i32_0 : i32
    scf.if %2 {
      %c0_48 = arith.constant 0 : index
      %c0_49 = arith.constant 0 : index
      %c0_50 = arith.constant 0 : index
      %109 = vector.load %arg4[%c0_48, %c0_49, %c0_50] : memref<2x2x128xf32, #tpu.memory_space<vmem>>, vector<2x2x128xf32>
      %c0_51 = arith.constant 0 : index
      %c0_52 = arith.constant 0 : index
      %c0_53 = arith.constant 0 : index
      %110 = vector.load %arg9[%c0_51, %c0_52, %c0_53] : memref<2x2x128xf32, #tpu.memory_space<vmem>>, vector<2x2x128xf32>
      tpu.vector_store %arg9[%c0_51, %c0_52, %c0_53], %109 {strides = array<i32>} : memref<2x2x128xf32, #tpu.memory_space<vmem>>, vector<2x2x128xf32>,
    } else {
    }
    %c0 = arith.constant 0 : index
    %c0_1 = arith.constant 0 : index
    %3 = vector.load %arg1[%c0, %c0_1] : memref<128x128xf32, #tpu.memory_space<vmem>>, vector<128x128xf32>
    %c0_2 = arith.constant 0 : index
    %c0_3 = arith.constant 0 : index
    %4 = vector.load %arg2[%c0_2, %c0_3] : memref<256x256xf32, #tpu.memory_space<vmem>>, vector<256x256xf32>
    %c0_4 = arith.constant 0 : index
    %c0_5 = arith.constant 0 : index
    %5 = vector.load %arg7[%c0_4, %c0_5] : memref<8x128xf32, #tpu.memory_space<vmem>>, vector<8x128xf32>
    %c0_6 = arith.constant 0 : index
    %c0_7 = arith.constant 0 : index
    %c0_8 = arith.constant 0 : index
    %6 = vector.load %arg3[%c0_6, %c0_7, %c0_8] : memref<1x2x128xf32, #tpu.memory_space<vmem>>, vector<1x2x128xf32>
    %7 = vector.shape_cast %6 : vector<1x2x128xf32> to vector<2x128xf32>
    %c0_9 = arith.constant 0 : index
    %c0_10 = arith.constant 0 : index
    %c0_11 = arith.constant 0 : index
    %8 = vector.load %arg9[%c0_9, %c0_10, %c0_11] : memref<2x2x128xf32, #tpu.memory_space<vmem>>, vector<1x2x128xf32>
    %9 = vector.shape_cast %8 : vector<1x2x128xf32> to vector<2x128xf32>
    %10 = vector.extract_strided_slice %5 {offsets = [0, 0], sizes = [1, 128], strides = [1, 1]} : vector<8x128xf32> to vector<1x128xf32>
    %11 = vector.shape_cast %10 : vector<1x128xf32> to vector<128xf32>
    %12 = vector.shape_cast %11 : vector<128xf32> to vector<1x128xf32>
    %13 = vector.extract_strided_slice %5 {offsets = [1, 0], sizes = [1, 128], strides = [1, 1]} : vector<8x128xf32> to vector<1x128xf32>
    %14 = vector.shape_cast %13 : vector<1x128xf32> to vector<128xf32>
    %15 = vector.shape_cast %14 : vector<128xf32> to vector<1x128xf32>
    %16 = vector.extract_strided_slice %5 {offsets = [2, 0], sizes = [1, 128], strides = [1, 1]} : vector<8x128xf32> to vector<1x128xf32>
    %17 = vector.shape_cast %16 : vector<1x128xf32> to vector<128xf32>
    %18 = vector.shape_cast %17 : vector<128xf32> to vector<1x128xf32>
    %19 = tpu.concatenate %7, %9 in 1 : vector<2x128xf32>, vector<2x128xf32> -> vector<2x256xf32>
    %c0_12 = arith.constant 0 : index
    %c0_13 = arith.constant 0 : index
    %c0_14 = arith.constant 0 : index
    %20 = vector.load %arg5[%c0_12, %c0_13, %c0_14] : memref<2x256x256xf32, #tpu.memory_space<vmem>>, vector<1x256x256xf32>
    %21 = vector.shape_cast %20 : vector<1x256x256xf32> to vector<256x256xf32>
    %cst = arith.constant dense<0.000000e+00> : vector<2x256xf32>
    %22 = tpu.matmul %19, %21, %cst {dimension_numbers = #tpu.dot_dimension_numbers<[1], [0], [0], [1], [0, 0, 1, 1], [], []>} : vector<2x256xf32>, vector<256x256xf32>, vector<2x256xf32> -> vector<2x256xf32>
    %cst_15 = arith.constant dense<0.000000e+00> : vector<2x256xf32>
    %23 = tpu.matmul %22, %4, %cst_15 {dimension_numbers = #tpu.dot_dimension_numbers<[1], [0], [0], [1], [0, 0, 1, 1], [], []>} : vector<2x256xf32>, vector<256x256xf32>, vector<2x256xf32> -> vector<2x256xf32>
    %24 = vector.extract_strided_slice %23 {offsets = [0, 0], sizes = [2, 128], strides = [1, 1]} : vector<2x256xf32> to vector<2x128xf32>
    %25 = vector.broadcast %12 : vector<1x128xf32> to vector<2x128xf32>
    %26 = arith.addf %24, %25 : vector<2x128xf32>
    %27 = arith.negf %26 : vector<2x128xf32>
    %28 = math.exp %27 : vector<2x128xf32>
    %cst_16 = arith.constant 1.000000e+00 : f32
    %29 = vector.broadcast %cst_16 : f32 to vector<2x128xf32>
    %30 = arith.addf %29, %28 : vector<2x128xf32>
    %31 = arith.divf %29, %30 : vector<2x128xf32>
    %32 = vector.extract_strided_slice %23 {offsets = [0, 128], sizes = [2, 128], strides = [1, 1]} : vector<2x256xf32> to vector<2x128xf32>
    %33 = vector.broadcast %15 : vector<1x128xf32> to vector<2x128xf32>
    %34 = arith.addf %32, %33 : vector<2x128xf32>
    %35 = arith.negf %34 : vector<2x128xf32>
    %36 = math.exp %35 : vector<2x128xf32>
    %cst_17 = arith.constant 1.000000e+00 : f32
    %37 = vector.broadcast %cst_17 : f32 to vector<2x128xf32>
    %38 = arith.addf %37, %36 : vector<2x128xf32>
    %39 = arith.divf %37, %38 : vector<2x128xf32>
    %40 = arith.mulf %31, %9 : vector<2x128xf32>
    %41 = tpu.concatenate %7, %40 in 1 : vector<2x128xf32>, vector<2x128xf32> -> vector<2x256xf32>
    %c0_18 = arith.constant 0 : index
    %c0_19 = arith.constant 0 : index
    %c0_20 = arith.constant 0 : index
    %42 = vector.load %arg6[%c0_18, %c0_19, %c0_20] : memref<2x256x128xf32, #tpu.memory_space<vmem>>, vector<1x256x128xf32>
    %43 = vector.shape_cast %42 : vector<1x256x128xf32> to vector<256x128xf32>
    %cst_21 = arith.constant dense<0.000000e+00> : vector<2x128xf32>
    %44 = tpu.matmul %41, %43, %cst_21 {dimension_numbers = #tpu.dot_dimension_numbers<[1], [0], [0], [1], [0, 0, 1, 1], [], []>} : vector<2x256xf32>, vector<256x128xf32>, vector<2x128xf32> -> vector<2x128xf32>
    %cst_22 = arith.constant dense<0.000000e+00> : vector<2x128xf32>
    %45 = tpu.matmul %44, %3, %cst_22 {dimension_numbers = #tpu.dot_dimension_numbers<[1], [0], [0], [1], [0, 0, 1, 1], [], []>} : vector<2x128xf32>, vector<128x128xf32>, vector<2x128xf32> -> vector<2x128xf32>
    %46 = vector.broadcast %18 : vector<1x128xf32> to vector<2x128xf32>
    %47 = arith.addf %45, %46 : vector<2x128xf32>
    %48 = math.tanh %47 : vector<2x128xf32>
    %49 = arith.mulf %39, %9 : vector<2x128xf32>
    %cst_23 = arith.constant 1.000000e+00 : f32
    %50 = vector.broadcast %cst_23 : f32 to vector<2x128xf32>
    %51 = arith.subf %50, %39 : vector<2x128xf32>
    %52 = arith.mulf %51, %48 : vector<2x128xf32>
    %53 = arith.addf %49, %52 : vector<2x128xf32>
    %c0_24 = arith.constant 0 : index
    %c0_25 = arith.constant 0 : index
    %c0_26 = arith.constant 0 : index
    %54 = vector.load %arg9[%c0_24, %c0_25, %c0_26] : memref<2x2x128xf32, #tpu.memory_space<vmem>>, vector<1x2x128xf32>
    %55 = vector.shape_cast %54 : vector<1x2x128xf32> to vector<2x128xf32>
    %56 = vector.shape_cast %53 : vector<2x128xf32> to vector<1x2x128xf32>
    tpu.vector_store %arg9[%c0_24, %c0_25, %c0_26], %56 {strides = array<i32>} : memref<2x2x128xf32, #tpu.memory_space<vmem>>, vector<1x2x128xf32>,
    %c1 = arith.constant 1 : index
    %c0_27 = arith.constant 0 : index
    %c0_28 = arith.constant 0 : index
    %57 = vector.load %arg9[%c1, %c0_27, %c0_28] : memref<2x2x128xf32, #tpu.memory_space<vmem>>, vector<1x2x128xf32>
    %58 = vector.shape_cast %57 : vector<1x2x128xf32> to vector<2x128xf32>
    %59 = vector.extract_strided_slice %5 {offsets = [3, 0], sizes = [1, 128], strides = [1, 1]} : vector<8x128xf32> to vector<1x128xf32>
    %60 = vector.shape_cast %59 : vector<1x128xf32> to vector<128xf32>
    %61 = vector.shape_cast %60 : vector<128xf32> to vector<1x128xf32>
    %62 = vector.extract_strided_slice %5 {offsets = [4, 0], sizes = [1, 128], strides = [1, 1]} : vector<8x128xf32> to vector<1x128xf32>
    %63 = vector.shape_cast %62 : vector<1x128xf32> to vector<128xf32>
    %64 = vector.shape_cast %63 : vector<128xf32> to vector<1x128xf32>
    %65 = vector.extract_strided_slice %5 {offsets = [5, 0], sizes = [1, 128], strides = [1, 1]} : vector<8x128xf32> to vector<1x128xf32>
    %66 = vector.shape_cast %65 : vector<1x128xf32> to vector<128xf32>
    %67 = vector.shape_cast %66 : vector<128xf32> to vector<1x128xf32>
    %68 = tpu.concatenate %53, %58 in 1 : vector<2x128xf32>, vector<2x128xf32> -> vector<2x256xf32>
    %c1_29 = arith.constant 1 : index
    %c0_30 = arith.constant 0 : index
    %c0_31 = arith.constant 0 : index
    %69 = vector.load %arg5[%c1_29, %c0_30, %c0_31] : memref<2x256x256xf32, #tpu.memory_space<vmem>>, vector<1x256x256xf32>
    %70 = vector.shape_cast %69 : vector<1x256x256xf32> to vector<256x256xf32>
    %cst_32 = arith.constant dense<0.000000e+00> : vector<2x256xf32>
    %71 = tpu.matmul %68, %70, %cst_32 {dimension_numbers = #tpu.dot_dimension_numbers<[1], [0], [0], [1], [0, 0, 1, 1], [], []>} : vector<2x256xf32>, vector<256x256xf32>, vector<2x256xf32> -> vector<2x256xf32>
    %cst_33 = arith.constant dense<0.000000e+00> : vector<2x256xf32>
    %72 = tpu.matmul %71, %4, %cst_33 {dimension_numbers = #tpu.dot_dimension_numbers<[1], [0], [0], [1], [0, 0, 1, 1], [], []>} : vector<2x256xf32>, vector<256x256xf32>, vector<2x256xf32> -> vector<2x256xf32>
    %73 = vector.extract_strided_slice %72 {offsets = [0, 0], sizes = [2, 128], strides = [1, 1]} : vector<2x256xf32> to vector<2x128xf32>
    %74 = vector.broadcast %61 : vector<1x128xf32> to vector<2x128xf32>
    %75 = arith.addf %73, %74 : vector<2x128xf32>
    %76 = arith.negf %75 : vector<2x128xf32>
    %77 = math.exp %76 : vector<2x128xf32>
    %cst_34 = arith.constant 1.000000e+00 : f32
    %78 = vector.broadcast %cst_34 : f32 to vector<2x128xf32>
    %79 = arith.addf %78, %77 : vector<2x128xf32>
    %80 = arith.divf %78, %79 : vector<2x128xf32>
    %81 = vector.extract_strided_slice %72 {offsets = [0, 128], sizes = [2, 128], strides = [1, 1]} : vector<2x256xf32> to vector<2x128xf32>
    %82 = vector.broadcast %64 : vector<1x128xf32> to vector<2x128xf32>
    %83 = arith.addf %81, %82 : vector<2x128xf32>
    %84 = arith.negf %83 : vector<2x128xf32>
    %85 = math.exp %84 : vector<2x128xf32>
    %cst_35 = arith.constant 1.000000e+00 : f32
    %86 = vector.broadcast %cst_35 : f32 to vector<2x128xf32>
    %87 = arith.addf %86, %85 : vector<2x128xf32>
    %88 = arith.divf %86, %87 : vector<2x128xf32>
    %89 = arith.mulf %80, %58 : vector<2x128xf32>
    %90 = tpu.concatenate %53, %89 in 1 : vector<2x128xf32>, vector<2x128xf32> -> vector<2x256xf32>
    %c1_36 = arith.constant 1 : index
    %c0_37 = arith.constant 0 : index
    %c0_38 = arith.constant 0 : index
    %91 = vector.load %arg6[%c1_36, %c0_37, %c0_38] : memref<2x256x128xf32, #tpu.memory_space<vmem>>, vector<1x256x128xf32>
    %92 = vector.shape_cast %91 : vector<1x256x128xf32> to vector<256x128xf32>
    %cst_39 = arith.constant dense<0.000000e+00> : vector<2x128xf32>
    %93 = tpu.matmul %90, %92, %cst_39 {dimension_numbers = #tpu.dot_dimension_numbers<[1], [0], [0], [1], [0, 0, 1, 1], [], []>} : vector<2x256xf32>, vector<256x128xf32>, vector<2x128xf32> -> vector<2x128xf32>
    %cst_40 = arith.constant dense<0.000000e+00> : vector<2x128xf32>
    %94 = tpu.matmul %93, %3, %cst_40 {dimension_numbers = #tpu.dot_dimension_numbers<[1], [0], [0], [1], [0, 0, 1, 1], [], []>} : vector<2x128xf32>, vector<128x128xf32>, vector<2x128xf32> -> vector<2x128xf32>
    %95 = vector.broadcast %67 : vector<1x128xf32> to vector<2x128xf32>
    %96 = arith.addf %94, %95 : vector<2x128xf32>
    %97 = math.tanh %96 : vector<2x128xf32>
    %98 = arith.mulf %88, %58 : vector<2x128xf32>
    %cst_41 = arith.constant 1.000000e+00 : f32
    %99 = vector.broadcast %cst_41 : f32 to vector<2x128xf32>
    %100 = arith.subf %99, %88 : vector<2x128xf32>
    %101 = arith.mulf %100, %97 : vector<2x128xf32>
    %102 = arith.addf %98, %101 : vector<2x128xf32>
    %c1_42 = arith.constant 1 : index
    %c0_43 = arith.constant 0 : index
    %c0_44 = arith.constant 0 : index
    %103 = vector.load %arg9[%c1_42, %c0_43, %c0_44] : memref<2x2x128xf32, #tpu.memory_space<vmem>>, vector<1x2x128xf32>
    %104 = vector.shape_cast %103 : vector<1x2x128xf32> to vector<2x128xf32>
    %105 = vector.shape_cast %102 : vector<2x128xf32> to vector<1x2x128xf32>
    tpu.vector_store %arg9[%c1_42, %c0_43, %c0_44], %105 {strides = array<i32>} : memref<2x2x128xf32, #tpu.memory_space<vmem>>, vector<1x2x128xf32>,
    %c0_45 = arith.constant 0 : index
    %c0_46 = arith.constant 0 : index
    %c0_47 = arith.constant 0 : index
    %106 = vector.load %arg8[%c0_45, %c0_46, %c0_47] : memref<1x2x128xf32, #tpu.memory_space<vmem>>, vector<1x2x128xf32>
    %107 = vector.shape_cast %106 : vector<1x2x128xf32> to vector<2x128xf32>
    %108 = vector.shape_cast %102 : vector<2x128xf32> to vector<1x2x128xf32>
    tpu.vector_store %arg8[%c0_45, %c0_46, %c0_47], %108 {strides = array<i32>} : memref<1x2x128xf32, #tpu.memory_space<vmem>>, vector<1x2x128xf32>,
    return
  }
  func.func @transform_0(%arg0: i32) -> (i32, i32) {
    %c0_i32 = arith.constant 0 : i32
    %c0_i32_0 = arith.constant 0 : i32
    %c0_i32_1 = arith.constant 0 : i32
    return %c0_i32, %c0_i32_0 : i32, i32
  }
  func.func @transform_1(%arg0: i32) -> (i32, i32) {
    %c0_i32 = arith.constant 0 : i32
    %c0_i32_0 = arith.constant 0 : i32
    %c0_i32_1 = arith.constant 0 : i32
    return %c0_i32, %c0_i32_0 : i32, i32
  }
  func.func @transform_2(%arg0: i32) -> (i32, i32, i32) {
    %c0_i32 = arith.constant 0 : i32
    %c0_i32_0 = arith.constant 0 : i32
    %c0_i32_1 = arith.constant 0 : i32
    return %arg0, %c0_i32, %c0_i32_0 : i32, i32, i32
  }
  func.func @transform_3(%arg0: i32) -> (i32, i32, i32) {
    %c0_i32 = arith.constant 0 : i32
    %c0_i32_0 = arith.constant 0 : i32
    %c0_i32_1 = arith.constant 0 : i32
    %c0_i32_2 = arith.constant 0 : i32
    return %c0_i32, %c0_i32_0, %c0_i32_1 : i32, i32, i32
  }
  func.func @transform_4(%arg0: i32) -> (i32, i32, i32) {
    %c0_i32 = arith.constant 0 : i32
    %c0_i32_0 = arith.constant 0 : i32
    %c0_i32_1 = arith.constant 0 : i32
    %c0_i32_2 = arith.constant 0 : i32
    return %c0_i32, %c0_i32_0, %c0_i32_1 : i32, i32, i32
  }
  func.func @transform_5(%arg0: i32) -> (i32, i32, i32) {
    %c0_i32 = arith.constant 0 : i32
    %c0_i32_0 = arith.constant 0 : i32
    %c0_i32_1 = arith.constant 0 : i32
    %c0_i32_2 = arith.constant 0 : i32
    return %c0_i32, %c0_i32_0, %c0_i32_1 : i32, i32, i32
  }
  func.func @transform_6(%arg0: i32) -> (i32, i32) {
    %c0_i32 = arith.constant 0 : i32
    %c0_i32_0 = arith.constant 0 : i32
    %c0_i32_1 = arith.constant 0 : i32
    return %c0_i32, %c0_i32_0 : i32, i32
  }
  func.func @transform_7(%arg0: i32) -> (i32, i32, i32) {
    %c0_i32 = arith.constant 0 : i32
    %c0_i32_0 = arith.constant 0 : i32
    %c0_i32_1 = arith.constant 0 : i32
    return %arg0, %c0_i32, %c0_i32_0 : i32, i32, i32
  }
  func.func @transform_8(%arg0: i32) -> (i32, i32, i32) {
    %c0_i32 = arith.constant 0 : i32
    %c0_i32_0 = arith.constant 0 : i32
    %c0_i32_1 = arith.constant 0 : i32
    %c0_i32_2 = arith.constant 0 : i32
    return %c0_i32, %c0_i32_0, %c0_i32_1 : i32, i32, i32
  }
}

</mosaic_0001>

<llo_original>
// kernel: encoder_forward_seq.1
$region0: #{encoder_forward_seq.1}
  #allocation0 [shape = 'u32[]', space=smem, size = 0x4, offset = 0x4, fixed_abs, tag = 'smem constant byte address 0x4 - core index']
  #allocation1 [shape = 'u32[144,128]{1,0:T(1,128)}', space=vmem, size = 0x12000, scoped, tag = 'internal scratch']
  %s0 = inlined_call_operand.hbm [shape: f32[128,128], index: 0, kind: input, shape index: {}]
  %s1 = inlined_call_operand.vmem [shape: f32[256,256], index: 1, kind: input, shape index: {}]
  %s2 = inlined_call_operand.vmem [shape: f32[8,2,128], index: 2, kind: input, shape index: {}]
  %s3 = inlined_call_operand.vmem [shape: f32[2,2,128], index: 3, kind: input, shape index: {}]
  %s4 = inlined_call_operand.hbm [shape: f32[2,256,256], index: 4, kind: input, shape index: {}]
  %s5 = inlined_call_operand.hbm [shape: f32[2,256,128], index: 5, kind: input, shape index: {}]
  %s6 = inlined_call_operand.vmem [shape: f32[8,128], index: 6, kind: input, shape index: {}]
  %s7 = inlined_call_operand.hbm [shape: f32[8,2,128], index: 7, kind: output, shape index: {0}]
  %s8 = inlined_call_operand.hbm [shape: f32[2,2,128], index: 8, kind: output, shape index: {1}]
  %9 = xla_tuple %s7, %s8
  %s10 = sld [smem:[#allocation0]]
  $region85: #{encoder_forward_seq.1} parent=0
    _
  %s12 = ssub.s32 1, %s10
  %s13 = scalar_select 0, %s12, %s10
  $region1: #{encoder_forward_seq.1} parent=0
    #allocation2 [shape = 'u8[65536]{0}', space=vmem, size = 0x10000, scoped, tag = 'input window, operand 0, single buffered']
    #allocation3 [shape = 's32[2]{0}', space=sflag, size = 0x8, scoped, tag = 'scoped memory for encoder_forward_seq.1']
    #allocation4 [shape = 's32[2]{0}', space=sflag, size = 0x8, scoped, tag = 'scoped memory for encoder_forward_seq.1']
    #allocation5 [shape = 'u8[524288]{0}', space=vmem, size = 0x80000, scoped, tag = 'input window, operand 4, single buffered']
    #allocation6 [shape = 's32[1]{0}', space=sflag, size = 0x4, scoped, tag = 'scoped memory for encoder_forward_seq.1']
    #allocation7 [shape = 'u8[262144]{0}', space=vmem, size = 0x40000, scoped, tag = 'input window, operand 5, single buffered']
    #allocation8 [shape = 'u8[2048]{0}', space=vmem, size = 0x800, scoped, tag = 'output window, operand 0']
    #allocation9 [shape = 'u8[2048]{0}', space=vmem, size = 0x800, scoped, tag = 'output window, operand 1, single buffered']
    #allocation10 [shape = 's32[1]{0}', space=sflag, size = 0x4, scoped, tag = 'scoped memory for encoder_forward_seq.1']
    %14 = vsyncpa [#allocation3], 0
    %15 = vsyncpa [#allocation6], 0
    %16 = vsyncpa [#allocation4], 0
    %s17 = scalar_lea.sflag [#allocation4], 1
    %18 = vsyncpa %s17, 0
    %19 = vsyncpa [#allocation10], 0
    loop: start=0, step=1, limit=10
    $region2: #{encoder_forward_seq.1} parent=1 // loop_pre_header
      _
    $region3: #{encoder_forward_seq.1} parent=1 // loop_header
      %s21 = sphi 0, %s25
      %p22 = scmp.ge.s32.totalorder %s21, 10
      %s29 = sphi 0, %s29
      %s31 = sphi 0, %s29
      %s32 = sphi 0, %s31
      %s46 = sphi 0, %s32
      %s50 = sphi 0, %s50
      %s52 = sphi 0, %s50
      %s53 = sphi 0, %s52
      %s67 = sphi 0, %s53
      %s73 = sphi 0, %s75
      %s76 = sphi 0, %s73
      %s77 = sphi 0, %s76
      %s93 = sphi 0, %s77
      %s97 = sphi 0, %s97
      %s99 = sphi 0, %s97
      %s100 = sphi 0, %s99
      %s114 = sphi 0, %s100
      %s118 = sphi 0, %s118
      %s120 = sphi 0, %s118
      %s121 = sphi 0, %s120
      %s135 = sphi 0, %s121
      %s139 = sphi 0, %s139
      %s141 = sphi 0, %s139
      %s142 = sphi 0, %s141
      %s156 = sphi 0, %s142
      %s160 = sphi 0, %s160
      %s162 = sphi 0, %s160
      %s163 = sphi 0, %s162
      %s177 = sphi 0, %s163
      %s183 = sphi 0, %s185
      %s186 = sphi 0, %s183
      %s187 = sphi 0, %s186
      %s203 = sphi 0, %s187
      %s207 = sphi 0, %s207
      %s209 = sphi 0, %s207
      %s210 = sphi 0, %s209
      %s224 = sphi 0, %s210
    $region4: #{encoder_forward_seq.1} parent=1 // loop_header_branch
      %24 = sbr.rel (%p22) target = $region8
    $region5: #{encoder_forward_seq.1} parent=1 // loop_body
      %s26 = ssub.s32 %s21, 1
      %s27 = ssub.s32 %s21, 2
      %s28 = sadd.s32 %s21, 1
      %s30 = sadd.s32 %s29, 1
      %p33 = scmp.eq.s32.totalorder %s21, 7
      %p34 = scmp.ne.s32.totalorder %s29, %s31
      %p35 = scmp.eq.s32.totalorder %s21, 0
      %p36 = por %p34, %p35
      %p37 = scmp.ne.s32.totalorder %s29, %s31
      %p38 = scmp.eq.s32.totalorder %s26, 7
      %p39 = por %p37, %p38
      %p40 = scmp.ne.s32.totalorder %s31, %s32
      %p41 = scmp.eq.s32.totalorder %s26, 0
      %p42 = por %p40, %p41
      %p43 = scmp.ne.s32.totalorder %s31, %s32
      %p44 = scmp.eq.s32.totalorder %s27, 7
      %p45 = por %p43, %p44
      %p47 = scmp.ne.s32.totalorder %s32, %s46
      %p48 = scmp.eq.s32.totalorder %s27, 0
      %p49 = por %p47, %p48
      %s51 = sadd.s32 %s50, 1
      %p54 = scmp.eq.s32.totalorder %s21, 7
      %p55 = scmp.ne.s32.totalorder %s50, %s52
      %p56 = scmp.eq.s32.totalorder %s21, 0
      %p57 = por %p55, %p56
      %p58 = scmp.ne.s32.totalorder %s50, %s52
      %p59 = scmp.eq.s32.totalorder %s26, 7
      %p60 = por %p58, %p59
      %p61 = scmp.ne.s32.totalorder %s52, %s53
      %p62 = scmp.eq.s32.totalorder %s26, 0
      %p63 = por %p61, %p62
      %p64 = scmp.ne.s32.totalorder %s52, %s53
      %p65 = scmp.eq.s32.totalorder %s27, 7
      %p66 = por %p64, %p65
      %p68 = scmp.ne.s32.totalorder %s53, %s67
      %p69 = scmp.eq.s32.totalorder %s27, 0
      %p70 = por %p68, %p69
      %s71 = ssub.s32 %s21, %s28
      %p72 = scmp.eq.s32.totalorder %s71, 0
      %s74 = sadd.s32 %s73, 1
      %s75 = scalar_select %p72, %s73, %s74
      %p78 = pneg %p72
      %p79 = scmp.eq.s32.totalorder %s21, 7
      %p80 = por %p78, %p79
      %p81 = scmp.ne.s32.totalorder %s73, %s76
      %p82 = scmp.eq.s32.totalorder %s21, 0
      %p83 = por %p81, %p82
      %p84 = scmp.ne.s32.totalorder %s73, %s76
      %p85 = scmp.eq.s32.totalorder %s26, 7
      %p86 = por %p84, %p85
      %p87 = scmp.ne.s32.totalorder %s76, %s77
      %p88 = scmp.eq.s32.totalorder %s26, 0
      %p89 = por %p87, %p88
      %p90 = scmp.ne.s32.totalorder %s76, %s77
      %p91 = scmp.eq.s32.totalorder %s27, 7
      %p92 = por %p90, %p91
      %p94 = scmp.ne.s32.totalorder %s77, %s93
      %p95 = scmp.eq.s32.totalorder %s27, 0
      %p96 = por %p94, %p95
      %s98 = sadd.s32 %s97, 1
      %p101 = scmp.eq.s32.totalorder %s21, 7
      %p102 = scmp.ne.s32.totalorder %s97, %s99
      %p103 = scmp.eq.s32.totalorder %s21, 0
      %p104 = por %p102, %p103
      %p105 = scmp.ne.s32.totalorder %s97, %s99
      %p106 = scmp.eq.s32.totalorder %s26, 7
      %p107 = por %p105, %p106
      %p108 = scmp.ne.s32.totalorder %s99, %s100
      %p109 = scmp.eq.s32.totalorder %s26, 0
      %p110 = por %p108, %p109
      %p111 = scmp.ne.s32.totalorder %s99, %s100
      %p112 = scmp.eq.s32.totalorder %s27, 7
      %p113 = por %p111, %p112
      %p115 = scmp.ne.s32.totalorder %s100, %s114
      %p116 = scmp.eq.s32.totalorder %s27, 0
      %p117 = por %p115, %p116
      %s119 = sadd.s32 %s118, 1
      %p122 = scmp.eq.s32.totalorder %s21, 7
      %p123 = scmp.ne.s32.totalorder %s118, %s120
      %p124 = scmp.eq.s32.totalorder %s21, 0
      %p125 = por %p123, %p124
      %p126 = scmp.ne.s32.totalorder %s118, %s120
      %p127 = scmp.eq.s32.totalorder %s26, 7
      %p128 = por %p126, %p127
      %p129 = scmp.ne.s32.totalorder %s120, %s121
      %p130 = scmp.eq.s32.totalorder %s26, 0
      %p131 = por %p129, %p130
      %p132 = scmp.ne.s32.totalorder %s120, %s121
      %p133 = scmp.eq.s32.totalorder %s27, 7
      %p134 = por %p132, %p133
      %p136 = scmp.ne.s32.totalorder %s121, %s135
      %p137 = scmp.eq.s32.totalorder %s27, 0
      %p138 = por %p136, %p137
      %s140 = sadd.s32 %s139, 1
      %p143 = scmp.eq.s32.totalorder %s21, 7
      %p144 = scmp.ne.s32.totalorder %s139, %s141
      %p145 = scmp.eq.s32.totalorder %s21, 0
      %p146 = por %p144, %p145
      %p147 = scmp.ne.s32.totalorder %s139, %s141
      %p148 = scmp.eq.s32.totalorder %s26, 7
      %p149 = por %p147, %p148
      %p150 = scmp.ne.s32.totalorder %s141, %s142
      %p151 = scmp.eq.s32.totalorder %s26, 0
      %p152 = por %p150, %p151
      %p153 = scmp.ne.s32.totalorder %s141, %s142
      %p154 = scmp.eq.s32.totalorder %s27, 7
      %p155 = por %p153, %p154
      %p157 = scmp.ne.s32.totalorder %s142, %s156
      %p158 = scmp.eq.s32.totalorder %s27, 0
      %p159 = por %p157, %p158
      %s161 = sadd.s32 %s160, 1
      %p164 = scmp.eq.s32.totalorder %s21, 7
      %p165 = scmp.ne.s32.totalorder %s160, %s162
      %p166 = scmp.eq.s32.totalorder %s21, 0
      %p167 = por %p165, %p166
      %p168 = scmp.ne.s32.totalorder %s160, %s162
      %p169 = scmp.eq.s32.totalorder %s26, 7
      %p170 = por %p168, %p169
      %p171 = scmp.ne.s32.totalorder %s162, %s163
      %p172 = scmp.eq.s32.totalorder %s26, 0
      %p173 = por %p171, %p172
      %p174 = scmp.ne.s32.totalorder %s162, %s163
      %p175 = scmp.eq.s32.totalorder %s27, 7
      %p176 = por %p174, %p175
      %p178 = scmp.ne.s32.totalorder %s163, %s177
      %p179 = scmp.eq.s32.totalorder %s27, 0
      %p180 = por %p178, %p179
      %s181 = ssub.s32 %s21, %s28
      %p182 = scmp.eq.s32.totalorder %s181, 0
      %s184 = sadd.s32 %s183, 1
      %s185 = scalar_select %p182, %s183, %s184
      %p188 = pneg %p182
      %p189 = scmp.eq.s32.totalorder %s21, 7
      %p190 = por %p188, %p189
      %p191 = scmp.ne.s32.totalorder %s183, %s186
      %p192 = scmp.eq.s32.totalorder %s21, 0
      %p193 = por %p191, %p192
      %p194 = scmp.ne.s32.totalorder %s183, %s186
      %p195 = scmp.eq.s32.totalorder %s26, 7
      %p196 = por %p194, %p195
      %p197 = scmp.ne.s32.totalorder %s186, %s187
      %p198 = scmp.eq.s32.totalorder %s26, 0
      %p199 = por %p197, %p198
      %p200 = scmp.ne.s32.totalorder %s186, %s187
      %p201 = scmp.eq.s32.totalorder %s27, 7
      %p202 = por %p200, %p201
      %p204 = scmp.ne.s32.totalorder %s187, %s203
      %p205 = scmp.eq.s32.totalorder %s27, 0
      %p206 = por %p204, %p205
      %s208 = sadd.s32 %s207, 1
      %p211 = scmp.eq.s32.totalorder %s21, 7
      %p212 = scmp.ne.s32.totalorder %s207, %s209
      %p213 = scmp.eq.s32.totalorder %s21, 0
      %p214 = por %p212, %p213
      %p215 = scmp.ne.s32.totalorder %s207, %s209
      %p216 = scmp.eq.s32.totalorder %s26, 7
      %p217 = por %p215, %p216
      %p218 = scmp.ne.s32.totalorder %s209, %s210
      %p219 = scmp.eq.s32.totalorder %s26, 0
      %p220 = por %p218, %p219
      %p221 = scmp.ne.s32.totalorder %s209, %s210
      %p222 = scmp.eq.s32.totalorder %s27, 7
      %p223 = por %p221, %p222
      %p225 = scmp.ne.s32.totalorder %s210, %s224
      %p226 = scmp.eq.s32.totalorder %s27, 0
      %p227 = por %p225, %p226
      %p228 = scmp.le.s32.totalorder 1, %s21
      %p229 = scmp.lt.s32.totalorder %s21, 9
      %p230 = pnand %p228, %p229
      %p231 = pneg %p230
      // Predicated region
      $region9: #{encoder_forward_seq.1} parent=5 // pred_check
        _
      $region10: #{encoder_forward_seq.1} parent=5 // pred_check_branch
        %233 = sbr.rel (%p230) target = $region12
      $region11: #{encoder_forward_seq.1} parent=5 // pred_region
        %s234 = ssub.s32 %s21, 1
        // Predicated region
        $region13: #{encoder_forward_seq.1} parent=11 // pred_check
          %p235 = pneg %p42
        $region14: #{encoder_forward_seq.1} parent=11 // pred_check_branch
          %237 = sbr.rel (%p235) target = $region16
        $region15: #{encoder_forward_seq.1} parent=11 // pred_region
          %s239 = ssub.s32 2048, 2048
          %240 = vsyncadd [#allocation3], %s239
          %s241 = sshll.u32 [#allocation2], 4
          %s242 = int_to_ptr.vmem [resolvable:$true] %s241
          %247 = dma.hbm_to_vmem [thread:$0]  %s0, 2048, %s242, [#allocation3], 128, 128, 8
        $region16: #{encoder_forward_seq.1} parent=11 // pred_fallthru
          _
        // Predicated region
        $region17: #{encoder_forward_seq.1} parent=11 // pred_check
          %p248 = pneg %p63
        $region18: #{encoder_forward_seq.1} parent=11 // pred_check_branch
          %250 = sbr.rel (%p248) target = $region20
        $region19: #{encoder_forward_seq.1} parent=11 // pred_region
          _
        $region20: #{encoder_forward_seq.1} parent=11 // pred_fallthru
          _
        // Predicated region
        $region21: #{encoder_forward_seq.1} parent=11 // pred_check
          %p251 = pneg %p110
        $region22: #{encoder_forward_seq.1} parent=11 // pred_check_branch
          %253 = sbr.rel (%p251) target = $region24
        $region23: #{encoder_forward_seq.1} parent=11 // pred_region
          _
        $region24: #{encoder_forward_seq.1} parent=11 // pred_fallthru
          _
        // Predicated region
        $region25: #{encoder_forward_seq.1} parent=11 // pred_check
          %p254 = pneg %p131
        $region26: #{encoder_forward_seq.1} parent=11 // pred_check_branch
          %256 = sbr.rel (%p254) target = $region28
        $region27: #{encoder_forward_seq.1} parent=11 // pred_region
          %s258 = ssub.s32 16384, 16384
          %259 = vsyncadd [#allocation6], %s258
          %s260 = sshll.u32 [#allocation5], 4
          %s261 = int_to_ptr.vmem [resolvable:$true] %s260
          %266 = dma.hbm_to_vmem [thread:$0]  %s4, 16384, %s261, [#allocation6], 256, 256, 16
        $region28: #{encoder_forward_seq.1} parent=11 // pred_fallthru
          _
        // Predicated region
        $region29: #{encoder_forward_seq.1} parent=11 // pred_check
          %p267 = pneg %p152
        $region30: #{encoder_forward_seq.1} parent=11 // pred_check_branch
          %269 = sbr.rel (%p267) target = $region32
        $region31: #{encoder_forward_seq.1} parent=11 // pred_region
          %s271 = ssub.s32 8192, 8192
          %272 = vsyncadd [#allocation6], %s271
          %s273 = sshll.u32 [#allocation7], 4
          %s274 = int_to_ptr.vmem [resolvable:$true] %s273
          %279 = dma.hbm_to_vmem [thread:$0]  %s5, 8192, %s274, [#allocation6], 128, 128, 8
        $region32: #{encoder_forward_seq.1} parent=11 // pred_fallthru
          _
        // Predicated region
        $region33: #{encoder_forward_seq.1} parent=11 // pred_check
          %p280 = pneg %p173
        $region34: #{encoder_forward_seq.1} parent=11 // pred_check_branch
          %282 = sbr.rel (%p280) target = $region36
        $region35: #{encoder_forward_seq.1} parent=11 // pred_region
          _
        $region36: #{encoder_forward_seq.1} parent=11 // pred_fallthru
          _
      $region12: #{encoder_forward_seq.1} parent=5 // pred_fallthru
        _
      %p283 = scmp.lt.s32.totalorder %s21, 8
      // Predicated region
      $region37: #{encoder_forward_seq.1} parent=5 // pred_check
        %p284 = pneg %p283
      $region38: #{encoder_forward_seq.1} parent=5 // pred_check_branch
        %286 = sbr.rel (%p284) target = $region40
      $region39: #{encoder_forward_seq.1} parent=5 // pred_region
        // Predicated region
        $region41: #{encoder_forward_seq.1} parent=39 // pred_check
          %p287 = pneg %p83
        $region42: #{encoder_forward_seq.1} parent=39 // pred_check_branch
          %289 = sbr.rel (%p287) target = $region44
        $region43: #{encoder_forward_seq.1} parent=39 // pred_region
          %p290 = scmp.lt.s32.totalorder %s21, 7
          %s291 = scalar_select %p290, %s21, 7
          %s292 = smul.addr %s291, 2
          %s293 = scalar_lea.vmem %s2, %s292
        $region44: #{encoder_forward_seq.1} parent=39 // pred_fallthru
          _
      $region40: #{encoder_forward_seq.1} parent=5 // pred_fallthru
        _
      %p294 = scmp.le.s32.totalorder 1, %s21
      %p295 = scmp.lt.s32.totalorder %s21, 9
      %p296 = pnand %p294, %p295
      %p297 = pneg %p296
      // Predicated region
      $region45: #{encoder_forward_seq.1} parent=5 // pred_check
        _
      $region46: #{encoder_forward_seq.1} parent=5 // pred_check_branch
        %299 = sbr.rel (%p296) target = $region48
      $region47: #{encoder_forward_seq.1} parent=5 // pred_region
        %s300 = ssub.s32 %s21, 1
        // Predicated region
        $region49: #{encoder_forward_seq.1} parent=47 // pred_check
          %p301 = pneg %p42
        $region50: #{encoder_forward_seq.1} parent=47 // pred_check_branch
          %303 = sbr.rel (%p301) target = $region52
        $region51: #{encoder_forward_seq.1} parent=47 // pred_region
          %304 = dma.done [#allocation3], 2048
        $region52: #{encoder_forward_seq.1} parent=47 // pred_fallthru
          _
        // Predicated region
        $region53: #{encoder_forward_seq.1} parent=47 // pred_check
          %p305 = pneg %p131
        $region54: #{encoder_forward_seq.1} parent=47 // pred_check_branch
          %307 = sbr.rel (%p305) target = $region56
        $region55: #{encoder_forward_seq.1} parent=47 // pred_region
          %308 = dma.done [#allocation6], 16384
        $region56: #{encoder_forward_seq.1} parent=47 // pred_fallthru
          _
        // Predicated region
        $region57: #{encoder_forward_seq.1} parent=47 // pred_check
          %p309 = pneg %p152
        $region58: #{encoder_forward_seq.1} parent=47 // pred_check_branch
          %311 = sbr.rel (%p309) target = $region60
        $region59: #{encoder_forward_seq.1} parent=47 // pred_region
          %312 = dma.done [#allocation6], 8192
        $region60: #{encoder_forward_seq.1} parent=47 // pred_fallthru
          _
        %p313 = pneg %p42
        %p314 = pneg %p39
        %p315 = pneg %p63
        %p316 = pneg %p60
        %p317 = scmp.lt.s32.totalorder %s26, 7
        %s318 = scalar_select %p317, %s26, 7
        %s319 = smul.addr %s318, 2
        %s320 = scalar_lea.vmem %s2, %s319
        %p321 = pneg %p89
        %p322 = pneg %p86
        %p323 = pneg %p110
        %p324 = pneg %p107
        %p325 = pneg %p131
        %p326 = pneg %p128
        %p327 = pneg %p152
        %p328 = pneg %p149
        %p329 = pneg %p173
        %p330 = pneg %p170
        %p331 = pneg %p199
        %p332 = pneg %p196
        %s333 = sand.u32 %s186, 1
        %s334 = scalar_lea.sflag [#allocation4], %s333
        %s335 = sand.u32 %s186, 1
        %s336 = smul.addr %s335, 2
        %s337 = scalar_lea.vmem [#allocation8], %s336
        %p338 = pneg %p220
        %p339 = pneg %p217
        %p340 = scmp.lt.s32.totalorder %s26, 7
        %s341 = scalar_select %p340, %s26, 7
        %s342 = smul.addr %s341, 2
        %s343 = scalar_lea.vmem %s2, %s342
        %p344 = scmp.eq.s32.totalorder %s26, 0
        // Predicated region
        $region61: #{encoder_forward_seq.1} parent=47 // pred_check
          %p345 = pneg %p344
        $region62: #{encoder_forward_seq.1} parent=47 // pred_check_branch
          %347 = sbr.rel (%p345) target = $region64
        $region63: #{encoder_forward_seq.1} parent=47 // pred_region
          %v348 = vld [vmem:[%s3] sm:$0x3]
          %v349 = vld [vmem:[%s3 + $0x2] sm:$0x3]
          %350 = vst [vmem:[#allocation9] sm:$0x3] %v348
          %351 = vst [vmem:[#allocation9 + $0x2] sm:$0x3] %v349
        $region64: #{encoder_forward_seq.1} parent=47 // pred_fallthru
          _
        %v352 = vld [vmem:[#allocation2] sm:$0xff]
        %v353 = vld [vmem:[#allocation2 + $0x8] sm:$0xff]
        %v354 = vld [vmem:[#allocation2 + $0x10] sm:$0xff]
        %v355 = vld [vmem:[#allocation2 + $0x18] sm:$0xff]
        %v356 = vld [vmem:[#allocation2 + $0x20] sm:$0xff]
        %v357 = vld [vmem:[#allocation2 + $0x28] sm:$0xff]
        %v358 = vld [vmem:[#allocation2 + $0x30] sm:$0xff]
        %v359 = vld [vmem:[#allocation2 + $0x38] sm:$0xff]
        %v360 = vld [vmem:[#allocation2 + $0x40] sm:$0xff]
        %v361 = vld [vmem:[#allocation2 + $0x48] sm:$0xff]
        %v362 = vld [vmem:[#allocation2 + $0x50] sm:$0xff]
        %v363 = vld [vmem:[#allocation2 + $0x58] sm:$0xff]
        %v364 = vld [vmem:[#allocation2 + $0x60] sm:$0xff]
        %v365 = vld [vmem:[#allocation2 + $0x68] sm:$0xff]
        %v366 = vld [vmem:[#allocation2 + $0x70] sm:$0xff]
        %v367 = vld [vmem:[#allocation2 + $0x78] sm:$0xff]
        %v368 = vld [vmem:[%s1] sm:$0xff]
        %v369 = vld [vmem:[%s1 + $0x8] sm:$0xff]
        %v370 = vld [vmem:[%s1 + $0x10] sm:$0xff]
        %v371 = vld [vmem:[%s1 + $0x18] sm:$0xff]
        %v372 = vld [vmem:[%s1 + $0x20] sm:$0xff]
        %v373 = vld [vmem:[%s1 + $0x28] sm:$0xff]
        %v374 = vld [vmem:[%s1 + $0x30] sm:$0xff]
        %v375 = vld [vmem:[%s1 + $0x38] sm:$0xff]
        %v376 = vld [vmem:[%s1 + $0x40] sm:$0xff]
        %v377 = vld [vmem:[%s1 + $0x48] sm:$0xff]
        %v378 = vld [vmem:[%s1 + $0x50] sm:$0xff]
        %v379 = vld [vmem:[%s1 + $0x58] sm:$0xff]
        %v380 = vld [vmem:[%s1 + $0x60] sm:$0xff]
        %v381 = vld [vmem:[%s1 + $0x68] sm:$0xff]
        %v382 = vld [vmem:[%s1 + $0x70] sm:$0xff]
        %v383 = vld [vmem:[%s1 + $0x78] sm:$0xff]
        %v384 = vld [vmem:[%s1 + $0x80] sm:$0xff]
        %v385 = vld [vmem:[%s1 + $0x88] sm:$0xff]
        %v386 = vld [vmem:[%s1 + $0x90] sm:$0xff]
        %v387 = vld [vmem:[%s1 + $0x98] sm:$0xff]
        %v388 = vld [vmem:[%s1 + $0xa0] sm:$0xff]
        %v389 = vld [vmem:[%s1 + $0xa8] sm:$0xff]
        %v390 = vld [vmem:[%s1 + $0xb0] sm:$0xff]
        %v391 = vld [vmem:[%s1 + $0xb8] sm:$0xff]
        %v392 = vld [vmem:[%s1 + $0xc0] sm:$0xff]
        %v393 = vld [vmem:[%s1 + $0xc8] sm:$0xff]
        %v394 = vld [vmem:[%s1 + $0xd0] sm:$0xff]
        %v395 = vld [vmem:[%s1 + $0xd8] sm:$0xff]
        %v396 = vld [vmem:[%s1 + $0xe0] sm:$0xff]
        %v397 = vld [vmem:[%s1 + $0xe8] sm:$0xff]
        %v398 = vld [vmem:[%s1 + $0xf0] sm:$0xff]
        %v399 = vld [vmem:[%s1 + $0xf8] sm:$0xff]
        %v400 = vld [vmem:[%s1 + $0x100] sm:$0xff]
        %v401 = vld [vmem:[%s1 + $0x108] sm:$0xff]
        %v402 = vld [vmem:[%s1 + $0x110] sm:$0xff]
        %v403 = vld [vmem:[%s1 + $0x118] sm:$0xff]
        %v404 = vld [vmem:[%s1 + $0x120] sm:$0xff]
        %v405 = vld [vmem:[%s1 + $0x128] sm:$0xff]
        %v406 = vld [vmem:[%s1 + $0x130] sm:$0xff]
        %v407 = vld [vmem:[%s1 + $0x138] sm:$0xff]
        %v408 = vld [vmem:[%s1 + $0x140] sm:$0xff]
        %v409 = vld [vmem:[%s1 + $0x148] sm:$0xff]
        %v410 = vld [vmem:[%s1 + $0x150] sm:$0xff]
        %v411 = vld [vmem:[%s1 + $0x158] sm:$0xff]
        %v412 = vld [vmem:[%s1 + $0x160] sm:$0xff]
        %v413 = vld [vmem:[%s1 + $0x168] sm:$0xff]
        %v414 = vld [vmem:[%s1 + $0x170] sm:$0xff]
        %v415 = vld [vmem:[%s1 + $0x178] sm:$0xff]
        %v416 = vld [vmem:[%s1 + $0x180] sm:$0xff]
        %v417 = vld [vmem:[%s1 + $0x188] sm:$0xff]
        %v418 = vld [vmem:[%s1 + $0x190] sm:$0xff]
        %v419 = vld [vmem:[%s1 + $0x198] sm:$0xff]
        %v420 = vld [vmem:[%s1 + $0x1a0] sm:$0xff]
        %v421 = vld [vmem:[%s1 + $0x1a8] sm:$0xff]
        %v422 = vld [vmem:[%s1 + $0x1b0] sm:$0xff]
        %v423 = vld [vmem:[%s1 + $0x1b8] sm:$0xff]
        %v424 = vld [vmem:[%s1 + $0x1c0] sm:$0xff]
        %v425 = vld [vmem:[%s1 + $0x1c8] sm:$0xff]
        %v426 = vld [vmem:[%s1 + $0x1d0] sm:$0xff]
        %v427 = vld [vmem:[%s1 + $0x1d8] sm:$0xff]
        %v428 = vld [vmem:[%s1 + $0x1e0] sm:$0xff]
        %v429 = vld [vmem:[%s1 + $0x1e8] sm:$0xff]
        %v430 = vld [vmem:[%s1 + $0x1f0] sm:$0xff]
        %v431 = vld [vmem:[%s1 + $0x1f8] sm:$0xff]
        %v432 = vld [vmem:[%s6] sm:$0xff]
        %v433 = vld [vmem:[%s343] sm:$0x3]
        %v434 = vld [vmem:[#allocation9] sm:$0x3]
        %v435 = vld [vmem:[#allocation5] sm:$0xff]
        %v436 = vld [vmem:[#allocation5 + $0x8] sm:$0xff]
        %v437 = vld [vmem:[#allocation5 + $0x10] sm:$0xff]
        %v438 = vld [vmem:[#allocation5 + $0x18] sm:$0xff]
        %v439 = vld [vmem:[#allocation5 + $0x20] sm:$0xff]
        %v440 = vld [vmem:[#allocation5 + $0x28] sm:$0xff]
        %v441 = vld [vmem:[#allocation5 + $0x30] sm:$0xff]
        %v442 = vld [vmem:[#allocation5 + $0x38] sm:$0xff]
        %v443 = vld [vmem:[#allocation5 + $0x40] sm:$0xff]
        %v444 = vld [vmem:[#allocation5 + $0x48] sm:$0xff]
        %v445 = vld [vmem:[#allocation5 + $0x50] sm:$0xff]
        %v446 = vld [vmem:[#allocation5 + $0x58] sm:$0xff]
        %v447 = vld [vmem:[#allocation5 + $0x60] sm:$0xff]
        %v448 = vld [vmem:[#allocation5 + $0x68] sm:$0xff]
        %v449 = vld [vmem:[#allocation5 + $0x70] sm:$0xff]
        %v450 = vld [vmem:[#allocation5 + $0x78] sm:$0xff]
        %v451 = vld [vmem:[#allocation5 + $0x80] sm:$0xff]
        %v452 = vld [vmem:[#allocation5 + $0x88] sm:$0xff]
        %v453 = vld [vmem:[#allocation5 + $0x90] sm:$0xff]
        %v454 = vld [vmem:[#allocation5 + $0x98] sm:$0xff]
        %v455 = vld [vmem:[#allocation5 + $0xa0] sm:$0xff]
        %v456 = vld [vmem:[#allocation5 + $0xa8] sm:$0xff]
        %v457 = vld [vmem:[#allocation5 + $0xb0] sm:$0xff]
        %v458 = vld [vmem:[#allocation5 + $0xb8] sm:$0xff]
        %v459 = vld [vmem:[#allocation5 + $0xc0] sm:$0xff]
        %v460 = vld [vmem:[#allocation5 + $0xc8] sm:$0xff]
        %v461 = vld [vmem:[#allocation5 + $0xd0] sm:$0xff]
        %v462 = vld [vmem:[#allocation5 + $0xd8] sm:$0xff]
        %v463 = vld [vmem:[#allocation5 + $0xe0] sm:$0xff]
        %v464 = vld [vmem:[#allocation5 + $0xe8] sm:$0xff]
        %v465 = vld [vmem:[#allocation5 + $0xf0] sm:$0xff]
        %v466 = vld [vmem:[#allocation5 + $0xf8] sm:$0xff]
        %v467 = vld [vmem:[#allocation5 + $0x100] sm:$0xff]
        %v468 = vld [vmem:[#allocation5 + $0x108] sm:$0xff]
        %v469 = vld [vmem:[#allocation5 + $0x110] sm:$0xff]
        %v470 = vld [vmem:[#allocation5 + $0x118] sm:$0xff]
        %v471 = vld [vmem:[#allocation5 + $0x120] sm:$0xff]
        %v472 = vld [vmem:[#allocation5 + $0x128] sm:$0xff]
        %v473 = vld [vmem:[#allocation5 + $0x130] sm:$0xff]
        %v474 = vld [vmem:[#allocation5 + $0x138] sm:$0xff]
        %v475 = vld [vmem:[#allocation5 + $0x140] sm:$0xff]
        %v476 = vld [vmem:[#allocation5 + $0x148] sm:$0xff]
        %v477 = vld [vmem:[#allocation5 + $0x150] sm:$0xff]
        %v478 = vld [vmem:[#allocation5 + $0x158] sm:$0xff]
        %v479 = vld [vmem:[#allocation5 + $0x160] sm:$0xff]
        %v480 = vld [vmem:[#allocation5 + $0x168] sm:$0xff]
        %v481 = vld [vmem:[#allocation5 + $0x170] sm:$0xff]
        %v482 = vld [vmem:[#allocation5 + $0x178] sm:$0xff]
        %v483 = vld [vmem:[#allocation5 + $0x180] sm:$0xff]
        %v484 = vld [vmem:[#allocation5 + $0x188] sm:$0xff]
        %v485 = vld [vmem:[#allocation5 + $0x190] sm:$0xff]
        %v486 = vld [vmem:[#allocation5 + $0x198] sm:$0xff]
        %v487 = vld [vmem:[#allocation5 + $0x1a0] sm:$0xff]
        %v488 = vld [vmem:[#allocation5 + $0x1a8] sm:$0xff]
        %v489 = vld [vmem:[#allocation5 + $0x1b0] sm:$0xff]
        %v490 = vld [vmem:[#allocation5 + $0x1b8] sm:$0xff]
        %v491 = vld [vmem:[#allocation5 + $0x1c0] sm:$0xff]
        %v492 = vld [vmem:[#allocation5 + $0x1c8] sm:$0xff]
        %v493 = vld [vmem:[#allocation5 + $0x1d0] sm:$0xff]
        %v494 = vld [vmem:[#allocation5 + $0x1d8] sm:$0xff]
        %v495 = vld [vmem:[#allocation5 + $0x1e0] sm:$0xff]
        %v496 = vld [vmem:[#allocation5 + $0x1e8] sm:$0xff]
        %v497 = vld [vmem:[#allocation5 + $0x1f0] sm:$0xff]
        %v498 = vld [vmem:[#allocation5 + $0x1f8] sm:$0xff]
        %499 = vmatprep.subr.mxu0 %v436
        %500 = vmatpush1.msra.mxu0 %v435
        %501 = vmatprep.subr.mxu0 %v438
        %502 = vmatpush1.msra.mxu0 %v437
        %503 = vmatprep.subr.mxu0 %v440
        %504 = vmatpush1.msra.mxu0 %v439
        %505 = vmatprep.subr.mxu0 %v442
        %506 = vmatpush1.msra.mxu0 %v441
        %507 = vmatprep.subr.mxu0 %v444
        %508 = vmatpush1.msra.mxu0 %v443
        %509 = vmatprep.subr.mxu0 %v446
        %510 = vmatpush1.msra.mxu0 %v445
        %511 = vmatprep.subr.mxu0 %v448
        %512 = vmatpush1.msra.mxu0 %v447
        %513 = vmatprep.subr.mxu0 %v450
        %514 = vmatpush1.msra.mxu0 %v449
        %515 = vmatprep.subr.mxu0 %v452
        %516 = vmatpush1.msra.mxu0 %v451
        %517 = vmatprep.subr.mxu0 %v454
        %518 = vmatpush1.msra.mxu0 %v453
        %519 = vmatprep.subr.mxu0 %v456
        %520 = vmatpush1.msra.mxu0 %v455
        %521 = vmatprep.subr.mxu0 %v458
        %522 = vmatpush1.msra.mxu0 %v457
        %523 = vmatprep.subr.mxu0 %v460
        %524 = vmatpush1.msra.mxu0 %v459
        %525 = vmatprep.subr.mxu0 %v462
        %526 = vmatpush1.msra.mxu0 %v461
        %527 = vmatprep.subr.mxu0 %v464
        %528 = vmatpush1.msra.mxu0 %v463
        %529 = vmatprep.subr.mxu0 %v466
        %530 = vmatpush1.msra.mxu0 %v465
        %531 = vmatprep.subr.mxu0 %v468
        %532 = vmatpush1.msra.mxu0 %v467
        %533 = vmatprep.subr.mxu0 %v470
        %534 = vmatpush1.msra.mxu0 %v469
        %535 = vmatprep.subr.mxu0 %v472
        %536 = vmatpush1.msra.mxu0 %v471
        %537 = vmatprep.subr.mxu0 %v474
        %538 = vmatpush1.msra.mxu0 %v473
        %539 = vmatprep.subr.mxu0 %v476
        %540 = vmatpush1.msra.mxu0 %v475
        %541 = vmatprep.subr.mxu0 %v478
        %542 = vmatpush1.msra.mxu0 %v477
        %543 = vmatprep.subr.mxu0 %v480
        %544 = vmatpush1.msra.mxu0 %v479
        %545 = vmatprep.subr.mxu0 %v482
        %546 = vmatpush1.msra.mxu0 %v481
        %547 = vmatprep.subr.mxu0 %v484
        %548 = vmatpush1.msra.mxu0 %v483
        %549 = vmatprep.subr.mxu0 %v486
        %550 = vmatpush1.msra.mxu0 %v485
        %551 = vmatprep.subr.mxu0 %v488
        %552 = vmatpush1.msra.mxu0 %v487
        %553 = vmatprep.subr.mxu0 %v490
        %554 = vmatpush1.msra.mxu0 %v489
        %555 = vmatprep.subr.mxu0 %v492
        %556 = vmatpush1.msra.mxu0 %v491
        %557 = vmatprep.subr.mxu0 %v494
        %558 = vmatpush1.msra.mxu0 %v493
        %559 = vmatprep.subr.mxu0 %v496
        %560 = vmatpush1.msra.mxu0 %v495
        %561 = vmatprep.subr.mxu0 %v498
        %562 = vmatpush1.msra.mxu0 %v497
        %563 = vmatprep.mubr.f32.mxu0 %v434
        %564 = vmatmul.mubr.f32.gmra.mrb[0].mxu0 %v433
        %v565 = vpop.f32.mrb[0].mxu0
        %v566 = vadd.f32 0.0, %v565
        %v567 = vpop.f32.mrb[0].mxu0
        %v568 = vadd.f32 0.0, %v567
        %569 = vdwg.mxu0
        %570 = vmatprep.subr.mxu0 %v369
        %571 = vmatpush1.msra.mxu0 %v368
        %572 = vmatprep.subr.mxu0 %v371
        %573 = vmatpush1.msra.mxu0 %v370
        %574 = vmatprep.subr.mxu0 %v373
        %575 = vmatpush1.msra.mxu0 %v372
        %576 = vmatprep.subr.mxu0 %v375
        %577 = vmatpush1.msra.mxu0 %v374
        %578 = vmatprep.subr.mxu0 %v377
        %579 = vmatpush1.msra.mxu0 %v376
        %580 = vmatprep.subr.mxu0 %v379
        %581 = vmatpush1.msra.mxu0 %v378
        %582 = vmatprep.subr.mxu0 %v381
        %583 = vmatpush1.msra.mxu0 %v380
        %584 = vmatprep.subr.mxu0 %v383
        %585 = vmatpush1.msra.mxu0 %v382
        %586 = vmatprep.subr.mxu0 %v385
        %587 = vmatpush1.msra.mxu0 %v384
        %588 = vmatprep.subr.mxu0 %v387
        %589 = vmatpush1.msra.mxu0 %v386
        %590 = vmatprep.subr.mxu0 %v389
        %591 = vmatpush1.msra.mxu0 %v388
        %592 = vmatprep.subr.mxu0 %v391
        %593 = vmatpush1.msra.mxu0 %v390
        %594 = vmatprep.subr.mxu0 %v393
        %595 = vmatpush1.msra.mxu0 %v392
        %596 = vmatprep.subr.mxu0 %v395
        %597 = vmatpush1.msra.mxu0 %v394
        %598 = vmatprep.subr.mxu0 %v397
        %599 = vmatpush1.msra.mxu0 %v396
        %600 = vmatprep.subr.mxu0 %v399
        %601 = vmatpush1.msra.mxu0 %v398
        %602 = vmatprep.subr.mxu0 %v401
        %603 = vmatpush1.msra.mxu0 %v400
        %604 = vmatprep.subr.mxu0 %v403
        %605 = vmatpush1.msra.mxu0 %v402
        %606 = vmatprep.subr.mxu0 %v405
        %607 = vmatpush1.msra.mxu0 %v404
        %608 = vmatprep.subr.mxu0 %v407
        %609 = vmatpush1.msra.mxu0 %v406
        %610 = vmatprep.subr.mxu0 %v409
        %611 = vmatpush1.msra.mxu0 %v408
        %612 = vmatprep.subr.mxu0 %v411
        %613 = vmatpush1.msra.mxu0 %v410
        %614 = vmatprep.subr.mxu0 %v413
        %615 = vmatpush1.msra.mxu0 %v412
        %616 = vmatprep.subr.mxu0 %v415
        %617 = vmatpush1.msra.mxu0 %v414
        %618 = vmatprep.subr.mxu0 %v417
        %619 = vmatpush1.msra.mxu0 %v416
        %620 = vmatprep.subr.mxu0 %v419
        %621 = vmatpush1.msra.mxu0 %v418
        %622 = vmatprep.subr.mxu0 %v421
        %623 = vmatpush1.msra.mxu0 %v420
        %624 = vmatprep.subr.mxu0 %v423
        %625 = vmatpush1.msra.mxu0 %v422
        %626 = vmatprep.subr.mxu0 %v425
        %627 = vmatpush1.msra.mxu0 %v424
        %628 = vmatprep.subr.mxu0 %v427
        %629 = vmatpush1.msra.mxu0 %v426
        %630 = vmatprep.subr.mxu0 %v429
        %631 = vmatpush1.msra.mxu0 %v428
        %632 = vmatprep.subr.mxu0 %v431
        %633 = vmatpush1.msra.mxu0 %v430
        %634 = vmatprep.mubr.f32.mxu0 %v568
        %635 = vmatmul.mubr.f32.gmra.mrb[0].mxu0 %v566
        %v636 = vpop.f32.mrb[0].mxu0
        %v637 = vadd.f32 0.0, %v636
        %v638 = vpop.f32.mrb[0].mxu0
        %v639 = vadd.f32 0.0, %v638
        %640 = vdwg.mxu0
        %v641 = vlaneseq
        %v642 = vshrl.u32 %v641, 7
        %v643 = vsub.s32 0, %v642
        %v644 = vrot.slane %v432, %v643
        %v645 = vadd.f32 %v637, %v644
        %v646 = vxor.u32 %v645, 2147483648
        %v647 = vmul.f32 %v646, 1.442695
        %v648 = vpow.pop %v647
        %v649 = vadd.f32 %v648, 1.0
        %v650 = vrcp.pop %v649
        %v651 = vmul.f32 1.0, %v650
        %v652 = vlaneseq
        %v653 = vshrl.u32 %v652, 7
        %v654 = vsub.s32 1, %v653
        %v655 = vrot.slane %v432, %v654
        %v656 = vadd.f32 %v639, %v655
        %v657 = vxor.u32 %v656, 2147483648
        %v658 = vmul.f32 %v657, 1.442695
        %v659 = vpow.pop %v658
        %v660 = vadd.f32 %v659, 1.0
        %v661 = vrcp.pop %v660
        %v662 = vmul.f32 1.0, %v661
        %v663 = vmul.f32 %v651, %v434
        %v664 = vld [vmem:[#allocation7] sm:$0xff]
        %v665 = vld [vmem:[#allocation7 + $0x8] sm:$0xff]
        %v666 = vld [vmem:[#allocation7 + $0x10] sm:$0xff]
        %v667 = vld [vmem:[#allocation7 + $0x18] sm:$0xff]
        %v668 = vld [vmem:[#allocation7 + $0x20] sm:$0xff]
        %v669 = vld [vmem:[#allocation7 + $0x28] sm:$0xff]
        %v670 = vld [vmem:[#allocation7 + $0x30] sm:$0xff]
        %v671 = vld [vmem:[#allocation7 + $0x38] sm:$0xff]
        %v672 = vld [vmem:[#allocation7 + $0x40] sm:$0xff]
        %v673 = vld [vmem:[#allocation7 + $0x48] sm:$0xff]
        %v674 = vld [vmem:[#allocation7 + $0x50] sm:$0xff]
        %v675 = vld [vmem:[#allocation7 + $0x58] sm:$0xff]
        %v676 = vld [vmem:[#allocation7 + $0x60] sm:$0xff]
        %v677 = vld [vmem:[#allocation7 + $0x68] sm:$0xff]
        %v678 = vld [vmem:[#allocation7 + $0x70] sm:$0xff]
        %v679 = vld [vmem:[#allocation7 + $0x78] sm:$0xff]
        %v680 = vld [vmem:[#allocation7 + $0x80] sm:$0xff]
        %v681 = vld [vmem:[#allocation7 + $0x88] sm:$0xff]
        %v682 = vld [vmem:[#allocation7 + $0x90] sm:$0xff]
        %v683 = vld [vmem:[#allocation7 + $0x98] sm:$0xff]
        %v684 = vld [vmem:[#allocation7 + $0xa0] sm:$0xff]
        %v685 = vld [vmem:[#allocation7 + $0xa8] sm:$0xff]
        %v686 = vld [vmem:[#allocation7 + $0xb0] sm:$0xff]
        %v687 = vld [vmem:[#allocation7 + $0xb8] sm:$0xff]
        %v688 = vld [vmem:[#allocation7 + $0xc0] sm:$0xff]
        %v689 = vld [vmem:[#allocation7 + $0xc8] sm:$0xff]
        %v690 = vld [vmem:[#allocation7 + $0xd0] sm:$0xff]
        %v691 = vld [vmem:[#allocation7 + $0xd8] sm:$0xff]
        %v692 = vld [vmem:[#allocation7 + $0xe0] sm:$0xff]
        %v693 = vld [vmem:[#allocation7 + $0xe8] sm:$0xff]
        %v694 = vld [vmem:[#allocation7 + $0xf0] sm:$0xff]
        %v695 = vld [vmem:[#allocation7 + $0xf8] sm:$0xff]
        %696 = vmatprep.subr.mxu0 0.0
        %697 = vmatpush1.msra.mxu0 %v664
        %698 = vmatprep.subr.mxu0 0.0
        %699 = vmatpush1.msra.mxu0 %v665
        %700 = vmatprep.subr.mxu0 0.0
        %701 = vmatpush1.msra.mxu0 %v666
        %702 = vmatprep.subr.mxu0 0.0
        %703 = vmatpush1.msra.mxu0 %v667
        %704 = vmatprep.subr.mxu0 0.0
        %705 = vmatpush1.msra.mxu0 %v668
        %706 = vmatprep.subr.mxu0 0.0
        %707 = vmatpush1.msra.mxu0 %v669
        %708 = vmatprep.subr.mxu0 0.0
        %709 = vmatpush1.msra.mxu0 %v670
        %710 = vmatprep.subr.mxu0 0.0
        %711 = vmatpush1.msra.mxu0 %v671
        %712 = vmatprep.subr.mxu0 0.0
        %713 = vmatpush1.msra.mxu0 %v672
        %714 = vmatprep.subr.mxu0 0.0
        %715 = vmatpush1.msra.mxu0 %v673
        %716 = vmatprep.subr.mxu0 0.0
        %717 = vmatpush1.msra.mxu0 %v674
        %718 = vmatprep.subr.mxu0 0.0
        %719 = vmatpush1.msra.mxu0 %v675
        %720 = vmatprep.subr.mxu0 0.0
        %721 = vmatpush1.msra.mxu0 %v676
        %722 = vmatprep.subr.mxu0 0.0
        %723 = vmatpush1.msra.mxu0 %v677
        %724 = vmatprep.subr.mxu0 0.0
        %725 = vmatpush1.msra.mxu0 %v678
        %726 = vmatprep.subr.mxu0 0.0
        %727 = vmatpush1.msra.mxu0 %v679
        %728 = vmatprep.subr.mxu0 0.0
        %729 = vmatpush1.msra.mxu0 %v680
        %730 = vmatprep.subr.mxu0 0.0
        %731 = vmatpush1.msra.mxu0 %v681
        %732 = vmatprep.subr.mxu0 0.0
        %733 = vmatpush1.msra.mxu0 %v682
        %734 = vmatprep.subr.mxu0 0.0
        %735 = vmatpush1.msra.mxu0 %v683
        %736 = vmatprep.subr.mxu0 0.0
        %737 = vmatpush1.msra.mxu0 %v684
        %738 = vmatprep.subr.mxu0 0.0
        %739 = vmatpush1.msra.mxu0 %v685
        %740 = vmatprep.subr.mxu0 0.0
        %741 = vmatpush1.msra.mxu0 %v686
        %742 = vmatprep.subr.mxu0 0.0
        %743 = vmatpush1.msra.mxu0 %v687
        %744 = vmatprep.subr.mxu0 0.0
        %745 = vmatpush1.msra.mxu0 %v688
        %746 = vmatprep.subr.mxu0 0.0
        %747 = vmatpush1.msra.mxu0 %v689
        %748 = vmatprep.subr.mxu0 0.0
        %749 = vmatpush1.msra.mxu0 %v690
        %750 = vmatprep.subr.mxu0 0.0
        %751 = vmatpush1.msra.mxu0 %v691
        %752 = vmatprep.subr.mxu0 0.0
        %753 = vmatpush1.msra.mxu0 %v692
        %754 = vmatprep.subr.mxu0 0.0
        %755 = vmatpush1.msra.mxu0 %v693
        %756 = vmatprep.subr.mxu0 0.0
        %757 = vmatpush1.msra.mxu0 %v694
        %758 = vmatprep.subr.mxu0 0.0
        %759 = vmatpush1.msra.mxu0 %v695
        %760 = vmatprep.mubr.f32.mxu0 %v663
        %761 = vmatmul.mubr.f32.gmra.mrb[0].mxu0 %v433
        %v762 = vpop.f32.mrb[0].mxu0
        %v763 = vadd.f32 0.0, %v762
        %v764 = vpop.f32.mrb[0].mxu0
        %765 = vdwg.mxu0
        %v766 = vlaneseq
        %v767 = vshrl.u32 %v766, 7
        %v768 = vsub.s32 2, %v767
        %v769 = vrot.slane %v432, %v768
        %770 = vmatprep.subr.mxu0 0.0
        %771 = vmatpush1.msra.mxu0 %v352
        %772 = vmatprep.subr.mxu0 0.0
        %773 = vmatpush1.msra.mxu0 %v353
        %774 = vmatprep.subr.mxu0 0.0
        %775 = vmatpush1.msra.mxu0 %v354
        %776 = vmatprep.subr.mxu0 0.0
        %777 = vmatpush1.msra.mxu0 %v355
        %778 = vmatprep.subr.mxu0 0.0
        %779 = vmatpush1.msra.mxu0 %v356
        %780 = vmatprep.subr.mxu0 0.0
        %781 = vmatpush1.msra.mxu0 %v357
        %782 = vmatprep.subr.mxu0 0.0
        %783 = vmatpush1.msra.mxu0 %v358
        %784 = vmatprep.subr.mxu0 0.0
        %785 = vmatpush1.msra.mxu0 %v359
        %786 = vmatprep.subr.mxu0 0.0
        %787 = vmatpush1.msra.mxu0 %v360
        %788 = vmatprep.subr.mxu0 0.0
        %789 = vmatpush1.msra.mxu0 %v361
        %790 = vmatprep.subr.mxu0 0.0
        %791 = vmatpush1.msra.mxu0 %v362
        %792 = vmatprep.subr.mxu0 0.0
        %793 = vmatpush1.msra.mxu0 %v363
        %794 = vmatprep.subr.mxu0 0.0
        %795 = vmatpush1.msra.mxu0 %v364
        %796 = vmatprep.subr.mxu0 0.0
        %797 = vmatpush1.msra.mxu0 %v365
        %798 = vmatprep.subr.mxu0 0.0
        %799 = vmatpush1.msra.mxu0 %v366
        %800 = vmatprep.subr.mxu0 0.0
        %801 = vmatpush1.msra.mxu0 %v367
        %802 = vmatprep.subr.mxu0 0.0
        %803 = vmatpush1.msra.mxu0 0.0
        %804 = vmatprep.subr.mxu0 0.0
        %805 = vmatpush1.msra.mxu0 0.0
        %806 = vmatprep.subr.mxu0 0.0
        %807 = vmatpush1.msra.mxu0 0.0
        %808 = vmatprep.subr.mxu0 0.0
        %809 = vmatpush1.msra.mxu0 0.0
        %810 = vmatprep.subr.mxu0 0.0
        %811 = vmatpush1.msra.mxu0 0.0
        %812 = vmatprep.subr.mxu0 0.0
        %813 = vmatpush1.msra.mxu0 0.0
        %814 = vmatprep.subr.mxu0 0.0
        %815 = vmatpush1.msra.mxu0 0.0
        %816 = vmatprep.subr.mxu0 0.0
        %817 = vmatpush1.msra.mxu0 0.0
        %818 = vmatprep.subr.mxu0 0.0
        %819 = vmatpush1.msra.mxu0 0.0
        %820 = vmatprep.subr.mxu0 0.0
        %821 = vmatpush1.msra.mxu0 0.0
        %822 = vmatprep.subr.mxu0 0.0
        %823 = vmatpush1.msra.mxu0 0.0
        %824 = vmatprep.subr.mxu0 0.0
        %825 = vmatpush1.msra.mxu0 0.0
        %826 = vmatprep.subr.mxu0 0.0
        %827 = vmatpush1.msra.mxu0 0.0
        %828 = vmatprep.subr.mxu0 0.0
        %829 = vmatpush1.msra.mxu0 0.0
        %830 = vmatprep.subr.mxu0 0.0
        %831 = vmatpush1.msra.mxu0 0.0
        %832 = vmatprep.subr.mxu0 0.0
        %833 = vmatpush1.msra.mxu0 0.0
        %834 = vmatprep.mubr.f32.mxu0 0.0
        %835 = vmatmul.mubr.f32.gmra.mrb[0].mxu0 %v763
        %v836 = vpop.f32.mrb[0].mxu0
        %v837 = vadd.f32 %v769, %v836
        %v838 = vpop.f32.mrb[0].mxu0
        %839 = vdwg.mxu0
        %v840 = vtanh.pop %v837
        %v841 = vmul.f32 %v662, %v434
        %v842 = vsub.f32 1.0, %v662
        %v843 = vmul.f32 %v842, %v840
        %v844 = vadd.f32 %v841, %v843
        %845 = vst [vmem:[#allocation9] sm:$0x3] %v844
        %s846 = scalar_lea.vmem [#allocation9], 2
        %v847 = vld [vmem:[%s846] sm:$0x3]
        %s848 = scalar_lea.vmem [#allocation5], 512
        %v849 = vld [vmem:[%s848] sm:$0xff]
        %v850 = vld [vmem:[%s848 + $0x8] sm:$0xff]
        %v851 = vld [vmem:[%s848 + $0x10] sm:$0xff]
        %v852 = vld [vmem:[%s848 + $0x18] sm:$0xff]
        %v853 = vld [vmem:[%s848 + $0x20] sm:$0xff]
        %v854 = vld [vmem:[%s848 + $0x28] sm:$0xff]
        %v855 = vld [vmem:[%s848 + $0x30] sm:$0xff]
        %v856 = vld [vmem:[%s848 + $0x38] sm:$0xff]
        %v857 = vld [vmem:[%s848 + $0x40] sm:$0xff]
        %v858 = vld [vmem:[%s848 + $0x48] sm:$0xff]
        %v859 = vld [vmem:[%s848 + $0x50] sm:$0xff]
        %v860 = vld [vmem:[%s848 + $0x58] sm:$0xff]
        %v861 = vld [vmem:[%s848 + $0x60] sm:$0xff]
        %v862 = vld [vmem:[%s848 + $0x68] sm:$0xff]
        %v863 = vld [vmem:[%s848 + $0x70] sm:$0xff]
        %v864 = vld [vmem:[%s848 + $0x78] sm:$0xff]
        %v865 = vld [vmem:[%s848 + $0x80] sm:$0xff]
        %v866 = vld [vmem:[%s848 + $0x88] sm:$0xff]
        %v867 = vld [vmem:[%s848 + $0x90] sm:$0xff]
        %v868 = vld [vmem:[%s848 + $0x98] sm:$0xff]
        %v869 = vld [vmem:[%s848 + $0xa0] sm:$0xff]
        %v870 = vld [vmem:[%s848 + $0xa8] sm:$0xff]
        %v871 = vld [vmem:[%s848 + $0xb0] sm:$0xff]
        %v872 = vld [vmem:[%s848 + $0xb8] sm:$0xff]
        %v873 = vld [vmem:[%s848 + $0xc0] sm:$0xff]
        %v874 = vld [vmem:[%s848 + $0xc8] sm:$0xff]
        %v875 = vld [vmem:[%s848 + $0xd0] sm:$0xff]
        %v876 = vld [vmem:[%s848 + $0xd8] sm:$0xff]
        %v877 = vld [vmem:[%s848 + $0xe0] sm:$0xff]
        %v878 = vld [vmem:[%s848 + $0xe8] sm:$0xff]
        %v879 = vld [vmem:[%s848 + $0xf0] sm:$0xff]
        %v880 = vld [vmem:[%s848 + $0xf8] sm:$0xff]
        %v881 = vld [vmem:[%s848 + $0x100] sm:$0xff]
        %v882 = vld [vmem:[%s848 + $0x108] sm:$0xff]
        %v883 = vld [vmem:[%s848 + $0x110] sm:$0xff]
        %v884 = vld [vmem:[%s848 + $0x118] sm:$0xff]
        %v885 = vld [vmem:[%s848 + $0x120] sm:$0xff]
        %v886 = vld [vmem:[%s848 + $0x128] sm:$0xff]
        %v887 = vld [vmem:[%s848 + $0x130] sm:$0xff]
        %v888 = vld [vmem:[%s848 + $0x138] sm:$0xff]
        %v889 = vld [vmem:[%s848 + $0x140] sm:$0xff]
        %v890 = vld [vmem:[%s848 + $0x148] sm:$0xff]
        %v891 = vld [vmem:[%s848 + $0x150] sm:$0xff]
        %v892 = vld [vmem:[%s848 + $0x158] sm:$0xff]
        %v893 = vld [vmem:[%s848 + $0x160] sm:$0xff]
        %v894 = vld [vmem:[%s848 + $0x168] sm:$0xff]
        %v895 = vld [vmem:[%s848 + $0x170] sm:$0xff]
        %v896 = vld [vmem:[%s848 + $0x178] sm:$0xff]
        %v897 = vld [vmem:[%s848 + $0x180] sm:$0xff]
        %v898 = vld [vmem:[%s848 + $0x188] sm:$0xff]
        %v899 = vld [vmem:[%s848 + $0x190] sm:$0xff]
        %v900 = vld [vmem:[%s848 + $0x198] sm:$0xff]
        %v901 = vld [vmem:[%s848 + $0x1a0] sm:$0xff]
        %v902 = vld [vmem:[%s848 + $0x1a8] sm:$0xff]
        %v903 = vld [vmem:[%s848 + $0x1b0] sm:$0xff]
        %v904 = vld [vmem:[%s848 + $0x1b8] sm:$0xff]
        %v905 = vld [vmem:[%s848 + $0x1c0] sm:$0xff]
        %v906 = vld [vmem:[%s848 + $0x1c8] sm:$0xff]
        %v907 = vld [vmem:[%s848 + $0x1d0] sm:$0xff]
        %v908 = vld [vmem:[%s848 + $0x1d8] sm:$0xff]
        %v909 = vld [vmem:[%s848 + $0x1e0] sm:$0xff]
        %v910 = vld [vmem:[%s848 + $0x1e8] sm:$0xff]
        %v911 = vld [vmem:[%s848 + $0x1f0] sm:$0xff]
        %v912 = vld [vmem:[%s848 + $0x1f8] sm:$0xff]
        %913 = vmatprep.subr.mxu0 %v850
        %914 = vmatpush1.msra.mxu0 %v849
        %915 = vmatprep.subr.mxu0 %v852
        %916 = vmatpush1.msra.mxu0 %v851
        %917 = vmatprep.subr.mxu0 %v854
        %918 = vmatpush1.msra.mxu0 %v853
        %919 = vmatprep.subr.mxu0 %v856
        %920 = vmatpush1.msra.mxu0 %v855
        %921 = vmatprep.subr.mxu0 %v858
        %922 = vmatpush1.msra.mxu0 %v857
        %923 = vmatprep.subr.mxu0 %v860
        %924 = vmatpush1.msra.mxu0 %v859
        %925 = vmatprep.subr.mxu0 %v862
        %926 = vmatpush1.msra.mxu0 %v861
        %927 = vmatprep.subr.mxu0 %v864
        %928 = vmatpush1.msra.mxu0 %v863
        %929 = vmatprep.subr.mxu0 %v866
        %930 = vmatpush1.msra.mxu0 %v865
        %931 = vmatprep.subr.mxu0 %v868
        %932 = vmatpush1.msra.mxu0 %v867
        %933 = vmatprep.subr.mxu0 %v870
        %934 = vmatpush1.msra.mxu0 %v869
        %935 = vmatprep.subr.mxu0 %v872
        %936 = vmatpush1.msra.mxu0 %v871
        %937 = vmatprep.subr.mxu0 %v874
        %938 = vmatpush1.msra.mxu0 %v873
        %939 = vmatprep.subr.mxu0 %v876
        %940 = vmatpush1.msra.mxu0 %v875
        %941 = vmatprep.subr.mxu0 %v878
        %942 = vmatpush1.msra.mxu0 %v877
        %943 = vmatprep.subr.mxu0 %v880
        %944 = vmatpush1.msra.mxu0 %v879
        %945 = vmatprep.subr.mxu0 %v882
        %946 = vmatpush1.msra.mxu0 %v881
        %947 = vmatprep.subr.mxu0 %v884
        %948 = vmatpush1.msra.mxu0 %v883
        %949 = vmatprep.subr.mxu0 %v886
        %950 = vmatpush1.msra.mxu0 %v885
        %951 = vmatprep.subr.mxu0 %v888
        %952 = vmatpush1.msra.mxu0 %v887
        %953 = vmatprep.subr.mxu0 %v890
        %954 = vmatpush1.msra.mxu0 %v889
        %955 = vmatprep.subr.mxu0 %v892
        %956 = vmatpush1.msra.mxu0 %v891
        %957 = vmatprep.subr.mxu0 %v894
        %958 = vmatpush1.msra.mxu0 %v893
        %959 = vmatprep.subr.mxu0 %v896
        %960 = vmatpush1.msra.mxu0 %v895
        %961 = vmatprep.subr.mxu0 %v898
        %962 = vmatpush1.msra.mxu0 %v897
        %963 = vmatprep.subr.mxu0 %v900
        %964 = vmatpush1.msra.mxu0 %v899
        %965 = vmatprep.subr.mxu0 %v902
        %966 = vmatpush1.msra.mxu0 %v901
        %967 = vmatprep.subr.mxu0 %v904
        %968 = vmatpush1.msra.mxu0 %v903
        %969 = vmatprep.subr.mxu0 %v906
        %970 = vmatpush1.msra.mxu0 %v905
        %971 = vmatprep.subr.mxu0 %v908
        %972 = vmatpush1.msra.mxu0 %v907
        %973 = vmatprep.subr.mxu0 %v910
        %974 = vmatpush1.msra.mxu0 %v909
        %975 = vmatprep.subr.mxu0 %v912
        %976 = vmatpush1.msra.mxu0 %v911
        %977 = vmatprep.mubr.f32.mxu0 %v847
        %978 = vmatmul.mubr.f32.gmra.mrb[0].mxu0 %v844
        %v979 = vpop.f32.mrb[0].mxu0
        %v980 = vadd.f32 0.0, %v979
        %v981 = vpop.f32.mrb[0].mxu0
        %v982 = vadd.f32 0.0, %v981
        %983 = vdwg.mxu0
        %984 = vmatprep.subr.mxu0 %v369
        %985 = vmatpush1.msra.mxu0 %v368
        %986 = vmatprep.subr.mxu0 %v371
        %987 = vmatpush1.msra.mxu0 %v370
        %988 = vmatprep.subr.mxu0 %v373
        %989 = vmatpush1.msra.mxu0 %v372
        %990 = vmatprep.subr.mxu0 %v375
        %991 = vmatpush1.msra.mxu0 %v374
        %992 = vmatprep.subr.mxu0 %v377
        %993 = vmatpush1.msra.mxu0 %v376
        %994 = vmatprep.subr.mxu0 %v379
        %995 = vmatpush1.msra.mxu0 %v378
        %996 = vmatprep.subr.mxu0 %v381
        %997 = vmatpush1.msra.mxu0 %v380
        %998 = vmatprep.subr.mxu0 %v383
        %999 = vmatpush1.msra.mxu0 %v382
        %1000 = vmatprep.subr.mxu0 %v385
        %1001 = vmatpush1.msra.mxu0 %v384
        %1002 = vmatprep.subr.mxu0 %v387
        %1003 = vmatpush1.msra.mxu0 %v386
        %1004 = vmatprep.subr.mxu0 %v389
        %1005 = vmatpush1.msra.mxu0 %v388
        %1006 = vmatprep.subr.mxu0 %v391
        %1007 = vmatpush1.msra.mxu0 %v390
        %1008 = vmatprep.subr.mxu0 %v393
        %1009 = vmatpush1.msra.mxu0 %v392
        %1010 = vmatprep.subr.mxu0 %v395
        %1011 = vmatpush1.msra.mxu0 %v394
        %1012 = vmatprep.subr.mxu0 %v397
        %1013 = vmatpush1.msra.mxu0 %v396
        %1014 = vmatprep.subr.mxu0 %v399
        %1015 = vmatpush1.msra.mxu0 %v398
        %1016 = vmatprep.subr.mxu0 %v401
        %1017 = vmatpush1.msra.mxu0 %v400
        %1018 = vmatprep.subr.mxu0 %v403
        %1019 = vmatpush1.msra.mxu0 %v402
        %1020 = vmatprep.subr.mxu0 %v405
        %1021 = vmatpush1.msra.mxu0 %v404
        %1022 = vmatprep.subr.mxu0 %v407
        %1023 = vmatpush1.msra.mxu0 %v406
        %1024 = vmatprep.subr.mxu0 %v409
        %1025 = vmatpush1.msra.mxu0 %v408
        %1026 = vmatprep.subr.mxu0 %v411
        %1027 = vmatpush1.msra.mxu0 %v410
        %1028 = vmatprep.subr.mxu0 %v413
        %1029 = vmatpush1.msra.mxu0 %v412
        %1030 = vmatprep.subr.mxu0 %v415
        %1031 = vmatpush1.msra.mxu0 %v414
        %1032 = vmatprep.subr.mxu0 %v417
        %1033 = vmatpush1.msra.mxu0 %v416
        %1034 = vmatprep.subr.mxu0 %v419
        %1035 = vmatpush1.msra.mxu0 %v418
        %1036 = vmatprep.subr.mxu0 %v421
        %1037 = vmatpush1.msra.mxu0 %v420
        %1038 = vmatprep.subr.mxu0 %v423
        %1039 = vmatpush1.msra.mxu0 %v422
        %1040 = vmatprep.subr.mxu0 %v425
        %1041 = vmatpush1.msra.mxu0 %v424
        %1042 = vmatprep.subr.mxu0 %v427
        %1043 = vmatpush1.msra.mxu0 %v426
        %1044 = vmatprep.subr.mxu0 %v429
        %1045 = vmatpush1.msra.mxu0 %v428
        %1046 = vmatprep.subr.mxu0 %v431
        %1047 = vmatpush1.msra.mxu0 %v430
        %1048 = vmatprep.mubr.f32.mxu0 %v982
        %1049 = vmatmul.mubr.f32.gmra.mrb[0].mxu0 %v980
        %v1050 = vpop.f32.mrb[0].mxu0
        %v1051 = vadd.f32 0.0, %v1050
        %v1052 = vpop.f32.mrb[0].mxu0
        %v1053 = vadd.f32 0.0, %v1052
        %1054 = vdwg.mxu0
        %v1055 = vlaneseq
        %v1056 = vshrl.u32 %v1055, 7
        %v1057 = vsub.s32 3, %v1056
        %v1058 = vrot.slane %v432, %v1057
        %v1059 = vadd.f32 %v1051, %v1058
        %v1060 = vxor.u32 %v1059, 2147483648
        %v1061 = vmul.f32 %v1060, 1.442695
        %v1062 = vpow.pop %v1061
        %v1063 = vadd.f32 %v1062, 1.0
        %v1064 = vrcp.pop %v1063
        %v1065 = vmul.f32 1.0, %v1064
        %v1066 = vlaneseq
        %v1067 = vshrl.u32 %v1066, 7
        %v1068 = vsub.s32 4, %v1067
        %v1069 = vrot.slane %v432, %v1068
        %v1070 = vadd.f32 %v1053, %v1069
        %v1071 = vxor.u32 %v1070, 2147483648
        %v1072 = vmul.f32 %v1071, 1.442695
        %v1073 = vpow.pop %v1072
        %v1074 = vadd.f32 %v1073, 1.0
        %v1075 = vrcp.pop %v1074
        %v1076 = vmul.f32 1.0, %v1075
        %v1077 = vmul.f32 %v1065, %v847
        %s1078 = scalar_lea.vmem [#allocation7], 256
        %v1079 = vld [vmem:[%s1078] sm:$0xff]
        %v1080 = vld [vmem:[%s1078 + $0x8] sm:$0xff]
        %v1081 = vld [vmem:[%s1078 + $0x10] sm:$0xff]
        %v1082 = vld [vmem:[%s1078 + $0x18] sm:$0xff]
        %v1083 = vld [vmem:[%s1078 + $0x20] sm:$0xff]
        %v1084 = vld [vmem:[%s1078 + $0x28] sm:$0xff]
        %v1085 = vld [vmem:[%s1078 + $0x30] sm:$0xff]
        %v1086 = vld [vmem:[%s1078 + $0x38] sm:$0xff]
        %v1087 = vld [vmem:[%s1078 + $0x40] sm:$0xff]
        %v1088 = vld [vmem:[%s1078 + $0x48] sm:$0xff]
        %v1089 = vld [vmem:[%s1078 + $0x50] sm:$0xff]
        %v1090 = vld [vmem:[%s1078 + $0x58] sm:$0xff]
        %v1091 = vld [vmem:[%s1078 + $0x60] sm:$0xff]
        %v1092 = vld [vmem:[%s1078 + $0x68] sm:$0xff]
        %v1093 = vld [vmem:[%s1078 + $0x70] sm:$0xff]
        %v1094 = vld [vmem:[%s1078 + $0x78] sm:$0xff]
        %v1095 = vld [vmem:[%s1078 + $0x80] sm:$0xff]
        %v1096 = vld [vmem:[%s1078 + $0x88] sm:$0xff]
        %v1097 = vld [vmem:[%s1078 + $0x90] sm:$0xff]
        %v1098 = vld [vmem:[%s1078 + $0x98] sm:$0xff]
        %v1099 = vld [vmem:[%s1078 + $0xa0] sm:$0xff]
        %v1100 = vld [vmem:[%s1078 + $0xa8] sm:$0xff]
        %v1101 = vld [vmem:[%s1078 + $0xb0] sm:$0xff]
        %v1102 = vld [vmem:[%s1078 + $0xb8] sm:$0xff]
        %v1103 = vld [vmem:[%s1078 + $0xc0] sm:$0xff]
        %v1104 = vld [vmem:[%s1078 + $0xc8] sm:$0xff]
        %v1105 = vld [vmem:[%s1078 + $0xd0] sm:$0xff]
        %v1106 = vld [vmem:[%s1078 + $0xd8] sm:$0xff]
        %v1107 = vld [vmem:[%s1078 + $0xe0] sm:$0xff]
        %v1108 = vld [vmem:[%s1078 + $0xe8] sm:$0xff]
        %v1109 = vld [vmem:[%s1078 + $0xf0] sm:$0xff]
        %v1110 = vld [vmem:[%s1078 + $0xf8] sm:$0xff]
        %1111 = vmatprep.subr.mxu0 0.0
        %1112 = vmatpush1.msra.mxu0 %v1079
        %1113 = vmatprep.subr.mxu0 0.0
        %1114 = vmatpush1.msra.mxu0 %v1080
        %1115 = vmatprep.subr.mxu0 0.0
        %1116 = vmatpush1.msra.mxu0 %v1081
        %1117 = vmatprep.subr.mxu0 0.0
        %1118 = vmatpush1.msra.mxu0 %v1082
        %1119 = vmatprep.subr.mxu0 0.0
        %1120 = vmatpush1.msra.mxu0 %v1083
        %1121 = vmatprep.subr.mxu0 0.0
        %1122 = vmatpush1.msra.mxu0 %v1084
        %1123 = vmatprep.subr.mxu0 0.0
        %1124 = vmatpush1.msra.mxu0 %v1085
        %1125 = vmatprep.subr.mxu0 0.0
        %1126 = vmatpush1.msra.mxu0 %v1086
        %1127 = vmatprep.subr.mxu0 0.0
        %1128 = vmatpush1.msra.mxu0 %v1087
        %1129 = vmatprep.subr.mxu0 0.0
        %1130 = vmatpush1.msra.mxu0 %v1088
        %1131 = vmatprep.subr.mxu0 0.0
        %1132 = vmatpush1.msra.mxu0 %v1089
        %1133 = vmatprep.subr.mxu0 0.0
        %1134 = vmatpush1.msra.mxu0 %v1090
        %1135 = vmatprep.subr.mxu0 0.0
        %1136 = vmatpush1.msra.mxu0 %v1091
        %1137 = vmatprep.subr.mxu0 0.0
        %1138 = vmatpush1.msra.mxu0 %v1092
        %1139 = vmatprep.subr.mxu0 0.0
        %1140 = vmatpush1.msra.mxu0 %v1093
        %1141 = vmatprep.subr.mxu0 0.0
        %1142 = vmatpush1.msra.mxu0 %v1094
        %1143 = vmatprep.subr.mxu0 0.0
        %1144 = vmatpush1.msra.mxu0 %v1095
        %1145 = vmatprep.subr.mxu0 0.0
        %1146 = vmatpush1.msra.mxu0 %v1096
        %1147 = vmatprep.subr.mxu0 0.0
        %1148 = vmatpush1.msra.mxu0 %v1097
        %1149 = vmatprep.subr.mxu0 0.0
        %1150 = vmatpush1.msra.mxu0 %v1098
        %1151 = vmatprep.subr.mxu0 0.0
        %1152 = vmatpush1.msra.mxu0 %v1099
        %1153 = vmatprep.subr.mxu0 0.0
        %1154 = vmatpush1.msra.mxu0 %v1100
        %1155 = vmatprep.subr.mxu0 0.0
        %1156 = vmatpush1.msra.mxu0 %v1101
        %1157 = vmatprep.subr.mxu0 0.0
        %1158 = vmatpush1.msra.mxu0 %v1102
        %1159 = vmatprep.subr.mxu0 0.0
        %1160 = vmatpush1.msra.mxu0 %v1103
        %1161 = vmatprep.subr.mxu0 0.0
        %1162 = vmatpush1.msra.mxu0 %v1104
        %1163 = vmatprep.subr.mxu0 0.0
        %1164 = vmatpush1.msra.mxu0 %v1105
        %1165 = vmatprep.subr.mxu0 0.0
        %1166 = vmatpush1.msra.mxu0 %v1106
        %1167 = vmatprep.subr.mxu0 0.0
        %1168 = vmatpush1.msra.mxu0 %v1107
        %1169 = vmatprep.subr.mxu0 0.0
        %1170 = vmatpush1.msra.mxu0 %v1108
        %1171 = vmatprep.subr.mxu0 0.0
        %1172 = vmatpush1.msra.mxu0 %v1109
        %1173 = vmatprep.subr.mxu0 0.0
        %1174 = vmatpush1.msra.mxu0 %v1110
        %1175 = vmatprep.mubr.f32.mxu0 %v1077
        %1176 = vmatmul.mubr.f32.gmra.mrb[0].mxu0 %v844
        %v1177 = vpop.f32.mrb[0].mxu0
        %v1178 = vadd.f32 0.0, %v1177
        %v1179 = vpop.f32.mrb[0].mxu0
        %1180 = vdwg.mxu0
        %v1181 = vlaneseq
        %v1182 = vshrl.u32 %v1181, 7
        %v1183 = vsub.s32 5, %v1182
        %v1184 = vrot.slane %v432, %v1183
        %1185 = vmatprep.subr.mxu0 0.0
        %1186 = vmatpush1.msra.mxu0 %v352
        %1187 = vmatprep.subr.mxu0 0.0
        %1188 = vmatpush1.msra.mxu0 %v353
        %1189 = vmatprep.subr.mxu0 0.0
        %1190 = vmatpush1.msra.mxu0 %v354
        %1191 = vmatprep.subr.mxu0 0.0
        %1192 = vmatpush1.msra.mxu0 %v355
        %1193 = vmatprep.subr.mxu0 0.0
        %1194 = vmatpush1.msra.mxu0 %v356
        %1195 = vmatprep.subr.mxu0 0.0
        %1196 = vmatpush1.msra.mxu0 %v357
        %1197 = vmatprep.subr.mxu0 0.0
        %1198 = vmatpush1.msra.mxu0 %v358
        %1199 = vmatprep.subr.mxu0 0.0
        %1200 = vmatpush1.msra.mxu0 %v359
        %1201 = vmatprep.subr.mxu0 0.0
        %1202 = vmatpush1.msra.mxu0 %v360
        %1203 = vmatprep.subr.mxu0 0.0
        %1204 = vmatpush1.msra.mxu0 %v361
        %1205 = vmatprep.subr.mxu0 0.0
        %1206 = vmatpush1.msra.mxu0 %v362
        %1207 = vmatprep.subr.mxu0 0.0
        %1208 = vmatpush1.msra.mxu0 %v363
        %1209 = vmatprep.subr.mxu0 0.0
        %1210 = vmatpush1.msra.mxu0 %v364
        %1211 = vmatprep.subr.mxu0 0.0
        %1212 = vmatpush1.msra.mxu0 %v365
        %1213 = vmatprep.subr.mxu0 0.0
        %1214 = vmatpush1.msra.mxu0 %v366
        %1215 = vmatprep.subr.mxu0 0.0
        %1216 = vmatpush1.msra.mxu0 %v367
        %1217 = vmatprep.subr.mxu0 0.0
        %1218 = vmatpush1.msra.mxu0 0.0
        %1219 = vmatprep.subr.mxu0 0.0
        %1220 = vmatpush1.msra.mxu0 0.0
        %1221 = vmatprep.subr.mxu0 0.0
        %1222 = vmatpush1.msra.mxu0 0.0
        %1223 = vmatprep.subr.mxu0 0.0
        %1224 = vmatpush1.msra.mxu0 0.0
        %1225 = vmatprep.subr.mxu0 0.0
        %1226 = vmatpush1.msra.mxu0 0.0
        %1227 = vmatprep.subr.mxu0 0.0
        %1228 = vmatpush1.msra.mxu0 0.0
        %1229 = vmatprep.subr.mxu0 0.0
        %1230 = vmatpush1.msra.mxu0 0.0
        %1231 = vmatprep.subr.mxu0 0.0
        %1232 = vmatpush1.msra.mxu0 0.0
        %1233 = vmatprep.subr.mxu0 0.0
        %1234 = vmatpush1.msra.mxu0 0.0
        %1235 = vmatprep.subr.mxu0 0.0
        %1236 = vmatpush1.msra.mxu0 0.0
        %1237 = vmatprep.subr.mxu0 0.0
        %1238 = vmatpush1.msra.mxu0 0.0
        %1239 = vmatprep.subr.mxu0 0.0
        %1240 = vmatpush1.msra.mxu0 0.0
        %1241 = vmatprep.subr.mxu0 0.0
        %1242 = vmatpush1.msra.mxu0 0.0
        %1243 = vmatprep.subr.mxu0 0.0
        %1244 = vmatpush1.msra.mxu0 0.0
        %1245 = vmatprep.subr.mxu0 0.0
        %1246 = vmatpush1.msra.mxu0 0.0
        %1247 = vmatprep.subr.mxu0 0.0
        %1248 = vmatpush1.msra.mxu0 0.0
        %1249 = vmatprep.mubr.f32.mxu0 0.0
        %1250 = vmatmul.mubr.f32.gmra.mrb[0].mxu0 %v1178
        %v1251 = vpop.f32.mrb[0].mxu0
        %v1252 = vadd.f32 %v1184, %v1251
        %v1253 = vpop.f32.mrb[0].mxu0
        %1254 = vdwg.mxu0
        %v1255 = vtanh.pop %v1252
        %v1256 = vmul.f32 %v1076, %v847
        %v1257 = vsub.f32 1.0, %v1076
        %v1258 = vmul.f32 %v1257, %v1255
        %v1259 = vadd.f32 %v1256, %v1258
        %1260 = vst [vmem:[%s846] sm:$0x3] %v1259
        %1261 = vst [vmem:[%s337] sm:$0x3] %v1259
        %s1262 = sand.u32 %s186, 1
        %s1263 = scalar_lea.sflag [#allocation4], %s1262
        %s1264 = sand.u32 %s186, 1
        %s1265 = smul.addr %s1264, 2
        %s1266 = scalar_lea.vmem [#allocation8], %s1265
        // Predicated region
        $region65: #{encoder_forward_seq.1} parent=47 // pred_check
          %p1267 = pneg %p196
        $region66: #{encoder_forward_seq.1} parent=47 // pred_check_branch
          %1269 = sbr.rel (%p1267) target = $region68
        $region67: #{encoder_forward_seq.1} parent=47 // pred_region
          %s1271 = ssub.s32 32, 32
          %1272 = vsyncadd %s1263, %s1271
          %s1273 = smul.addr %s26, 32
          %s1274 = scalar_lea.hbm %s7, %s1273
          %s1276 = sshll.u32 %s1266, 4
          %s1277 = int_to_ptr.vmem [resolvable:$true] %s1276
          %1279 = dma.vmem_to_hbm [thread:$0]  %s1277, 32, %s1274, %s1263
        $region68: #{encoder_forward_seq.1} parent=47 // pred_fallthru
          _
        // Predicated region
        $region69: #{encoder_forward_seq.1} parent=47 // pred_check
          %p1280 = pneg %p217
        $region70: #{encoder_forward_seq.1} parent=47 // pred_check_branch
          %1282 = sbr.rel (%p1280) target = $region72
        $region71: #{encoder_forward_seq.1} parent=47 // pred_region
          %s1284 = ssub.s32 64, 64
          %1285 = vsyncadd [#allocation10], %s1284
          %s1286 = sshll.u32 [#allocation9], 4
          %s1287 = int_to_ptr.vmem [resolvable:$true] %s1286
          %1292 = dma.vmem_to_hbm [thread:$0]  %s1287, 64, %s8, [#allocation10], 32, 32, 2
        $region72: #{encoder_forward_seq.1} parent=47 // pred_fallthru
          _
        // Predicated region
        $region73: #{encoder_forward_seq.1} parent=47 // pred_check
          %p1293 = pneg %p217
        $region74: #{encoder_forward_seq.1} parent=47 // pred_check_branch
          %1295 = sbr.rel (%p1293) target = $region76
        $region75: #{encoder_forward_seq.1} parent=47 // pred_region
          %1296 = dma.done [#allocation10], 64
        $region76: #{encoder_forward_seq.1} parent=47 // pred_fallthru
          _
      $region48: #{encoder_forward_seq.1} parent=5 // pred_fallthru
        _
      %p1297 = scmp.le.s32.totalorder 2, %s21
      // Predicated region
      $region77: #{encoder_forward_seq.1} parent=5 // pred_check
        %p1298 = pneg %p1297
      $region78: #{encoder_forward_seq.1} parent=5 // pred_check_branch
        %1300 = sbr.rel (%p1298) target = $region80
      $region79: #{encoder_forward_seq.1} parent=5 // pred_region
        %s1301 = ssub.s32 %s21, 2
        // Predicated region
        $region81: #{encoder_forward_seq.1} parent=79 // pred_check
          %p1302 = pneg %p202
        $region82: #{encoder_forward_seq.1} parent=79 // pred_check_branch
          %1304 = sbr.rel (%p1302) target = $region84
        $region83: #{encoder_forward_seq.1} parent=79 // pred_region
          %s1305 = sand.u32 %s187, 1
          %s1306 = scalar_lea.sflag [#allocation4], %s1305
          %s1307 = sand.u32 %s187, 1
          %s1308 = smul.addr %s1307, 2
          %s1309 = scalar_lea.vmem [#allocation8], %s1308
          %1310 = dma.done %s1306, 32
        $region84: #{encoder_forward_seq.1} parent=79 // pred_fallthru
          _
      $region80: #{encoder_forward_seq.1} parent=5 // pred_fallthru
        _
    $region6: #{encoder_forward_seq.1} parent=1 // loop_footer
      %s25 = sadd.s32 1, %s21
    $region7: #{encoder_forward_seq.1} parent=1 // loop_footer_branch
      %20 = sbr.rel target = $region3
    $region8: #{encoder_forward_seq.1} parent=1 // loop_exit
      _
    %1311 = vsyncpa [#allocation3], 1
    %s1312 = scalar_lea.sflag [#allocation3], 1
    %1313 = vsyncpa %s1312, 1
    %1314 = vsyncpa [#allocation6], 1
    %1315 = vsyncpa [#allocation4], 1
    %s1316 = scalar_lea.sflag [#allocation4], 1
    %1317 = vsyncpa %s1316, 1
    %1318 = vsyncpa [#allocation10], 1

</llo_original>
